<compile_context>
chip_gen: v7x
topology: tpu7x:2x2x1
jax: 0.10.0
libtpu: 0.0.40
codegen_flags: <defaults>
</compile_context>

<pallas_src>
import functools

import jax
import jax.numpy as jnp
from jax import lax
from jax.experimental import pallas as pl
from jax.experimental.pallas import tpu as pltpu


def _vqgan_layer_kernel(*refs, has_proj):
    if has_proj:
        (x_main_ref, x_halo_ref, w1_ref, b1_ref, w2_ref, b2_ref,
         ws_ref, bs_ref, o_ref, h_pad_ref) = refs
    else:
        (x_main_ref, x_halo_ref, w1_ref, b1_ref, w2_ref, b2_ref,
         o_ref, h_pad_ref) = refs
        ws_ref = bs_ref = None

    th = x_main_ref.shape[1]            # strip height
    wp = x_main_ref.shape[2]            # W + 2 (padded width)
    cin = x_main_ref.shape[3]
    w = wp - 2
    cout = o_ref.shape[2]
    s = pl.program_id(1)
    n_strips = pl.num_programs(1)

    # Padded-image rows [s*th - 2, s*th + th + 2): main strip + 4 halo rows,
    # concatenated along the (cheap) major axis.
    x = jnp.concatenate([x_main_ref[0], x_halo_ref[0]], axis=0)  # (th+4, W+2, Cin)
    xr = jnp.maximum(x, 0.0)                                     # conv1 input (shortcut uses raw x)

    # im2col over kw: xcat[r, c, kw*Cin:(kw+1)*Cin] == relu(x)[r, c+kw, :].
    # Built once per conv (2 shifted copies + one channel concat) instead of a
    # relayout per tap; the flatten is tile-aligned when W % 8 == 0.
    xcat = jnp.concatenate(
        [xr[:, 0:w, :], xr[:, 1:w + 1, :], xr[:, 2:w + 2, :]], axis=2)
    xcat_flat = xcat.reshape((th + 4) * w, 3 * cin)

    # conv1 over th+2 output rows (strip rows + 1-row conv2 halo on each side):
    # 3 MXU matmuls with K = 3*Cin, accumulated in f32 in a single value.
    acc1 = jnp.dot(xcat_flat[0:(th + 2) * w, :], w1_ref[0],
                   preferred_element_type=jnp.float32)
    for kh in (1, 2):
        acc1 = acc1 + jnp.dot(xcat_flat[kh * w:(kh + th + 2) * w, :], w1_ref[kh],
                              preferred_element_type=jnp.float32)
    h1 = jnp.maximum(acc1 + b1_ref[...], 0.0)                    # relu(conv1 + b1), f32

    # conv2 input = relu(h1) with conv2's zero padding, staged in VMEM scratch.
    # The interior is fully overwritten every step; only the border columns
    # (and the out-of-image halo row on the first/last strip) are zeroed.
    h_pad_ref[:, 1:w + 1, :] = h1.reshape(th + 2, w, cout).astype(h_pad_ref.dtype)
    col_zero = jnp.zeros((th + 2, 1, cout), h_pad_ref.dtype)
    h_pad_ref[:, 0:1, :] = col_zero
    h_pad_ref[:, w + 1:w + 2, :] = col_zero

    @pl.when(s == 0)
    def _():  # rows above the image are conv2's zero padding
        h_pad_ref[0:1, :, :] = jnp.zeros((1, wp, cout), h_pad_ref.dtype)

    @pl.when(s == n_strips - 1)
    def _():  # rows below the image are conv2's zero padding
        h_pad_ref[th + 1:th + 2, :, :] = jnp.zeros((1, wp, cout), h_pad_ref.dtype)

    # Shortcut (no ReLU), computed after conv1 so it is not live across the
    # conv1 matmuls; it directly seeds conv2's accumulator.
    x_center = x[2:th + 2, 1:w + 1, :].reshape(th * w, cin)
    if has_proj:
        acc2 = jnp.dot(x_center, ws_ref[...],
                       preferred_element_type=jnp.float32) + bs_ref[...]
    else:
        acc2 = x_center.astype(jnp.float32)      # identity shortcut: no matmul

    # conv2: same im2col-over-kw trick, 3 matmuls with K = 3*Cout.
    hp = h_pad_ref[...]
    hcat = jnp.concatenate(
        [hp[:, 0:w, :], hp[:, 1:w + 1, :], hp[:, 2:w + 2, :]], axis=2)
    hcat_flat = hcat.reshape((th + 2) * w, 3 * cout)
    for kh in range(3):
        acc2 = acc2 + jnp.dot(hcat_flat[kh * w:(kh + th) * w, :], w2_ref[kh],
                              preferred_element_type=jnp.float32)

    o_ref[0] = (acc2 + b2_ref[...]).astype(o_ref.dtype)


def vqgan_layer(x_nchw, params, *, block_h=None, compute_dtype=jnp.bfloat16):
    """Pallas VQGANLayer forward.  x_nchw: (B, Cin, H, W) f32 -> (B, Cout, H, W) f32."""
    w1, b1 = params["w1"], params["b1"]
    w2, b2 = params["w2"], params["b2"]
    has_proj = "ws" in params

    B, Cin, H, W = x_nchw.shape
    Cout = w1.shape[-1]
    if not has_proj:
        assert Cin == Cout, "identity shortcut requires Cin == Cout"
    assert H % 4 == 0, "kernel requires H % 4 == 0"  # TODO(synk): support other H

    if block_h is None:
        # Keep per-step VMEM modest even at C=512 / W=64 (fits v7x's 64 MiB).
        block_h = min(H, 32)
        while H % block_h or block_h % 4:
            block_h -= 4
    th = int(block_h)
    assert H % th == 0 and th % 4 == 0, "block_h must divide H and be a multiple of 4"
    n_strips = H // th

    # NCHW -> NHWC (channels on lanes).  Pad H by 2 (conv1 pad + conv2 halo),
    # W by 1 (conv1 pad); cast activations/weights to the MXU compute dtype
    # (bf16 by default), accumulate in f32 inside the kernel.
    # TODO(synk): if the surrounding model keeps NHWC activations, drop the two
    # transposes and fold the pad/cast into the kernel to save HBM passes.
    x = jnp.transpose(x_nchw, (0, 2, 3, 1))
    x_pad = jnp.pad(x, ((0, 0), (2, 2), (1, 1), (0, 0))).astype(compute_dtype)

    # Fold the kw axis into the contraction dim: (3, 3, Ci, Co) -> (3, 3*Ci, Co).
    w1c = w1.reshape(3, 3 * Cin, Cout).astype(compute_dtype)
    w2c = w2.reshape(3, 3 * Cout, Cout).astype(compute_dtype)
    b1f = b1.astype(jnp.float32)
    b2f = b2.astype(jnp.float32)

    def const_spec(shape):
        # Grid-invariant operand (weights / biases): fetched once (constant
        # index map).
        # TODO(synk): single-buffer these via pipeline_mode=pl.Buffered(1) once
        # that BlockSpec option is verified on the deployment jax version.
        return pl.BlockSpec(shape, lambda b, s: (0,) * len(shape))

    in_specs = [
        # TH-row strip of the padded image ...
        pl.BlockSpec((1, th, W + 2, Cin), lambda b, s: (b, s, 0, 0)),
        # ... plus the next 4 rows (2-row halo needed by the two stacked 3x3
        # convs), fetched as a second, non-overlapping block of the same array.
        pl.BlockSpec((1, 4, W + 2, Cin),
                     lambda b, s: (b, (s + 1) * (th // 4), 0, 0)),
        const_spec((3, 3 * Cin, Cout)),
        const_spec((1, Cout)),
        const_spec((3, 3 * Cout, Cout)),
        const_spec((1, Cout)),
    ]
    args = [x_pad, x_pad, w1c, b1f, w2c, b2f]
    if has_proj:
        in_specs += [const_spec((Cin, Cout)), const_spec((1, Cout))]
        args += [params["ws"].astype(compute_dtype),
                 params["bs"].astype(jnp.float32)]

    kernel = functools.partial(_vqgan_layer_kernel, has_proj=has_proj)

    out_flat = pl.pallas_call(
        kernel,
        out_shape=jax.ShapeDtypeStruct((B, H * W, Cout), jnp.float32),
        grid_spec=pltpu.PrefetchScalarGridSpec(
            num_scalar_prefetch=0,
            grid=(B, n_strips),
            in_specs=in_specs,
            # Lane-dense flattened output slab; un-flattened in XLA below.
            out_specs=pl.BlockSpec((1, th * W, Cout), lambda b, s: (b, s, 0)),
            scratch_shapes=[pltpu.VMEM((th + 2, W + 2, Cout), compute_dtype)],
        ),
        compiler_params=pltpu.CompilerParams(
            # Strips and batches are independent -> both parallel (v7x megacore).
            dimension_semantics=("parallel", "parallel"),
            # Explicit budget with headroom for v7x's 64 MiB physical VMEM.
            vmem_limit_bytes=48 * 1024 * 1024,
        ),
    )(*args)

    out = out_flat.reshape(B, H, W, Cout)
    return jnp.transpose(out, (0, 3, 1, 2))


def init_params(key, input_dim, output_dim):
    """Deterministic synthetic parameters (HWIO weight layout)."""
    k = jax.random.split(key, 6)
    p = {
        "w1": 0.1 * jax.random.normal(k[0], (3, 3, input_dim, output_dim), jnp.float32),
        "b1": 0.1 * jax.random.normal(k[1], (1, output_dim), jnp.float32),
        "w2": 0.1 * jax.random.normal(k[2], (3, 3, output_dim, output_dim), jnp.float32),
        "b2": 0.1 * jax.random.normal(k[3], (1, output_dim), jnp.float32),
    }
    if input_dim != output_dim:
        p["ws"] = 0.1 * jax.random.normal(k[4], (input_dim, output_dim), jnp.float32)
        p["bs"] = 0.1 * jax.random.normal(k[5], (1, output_dim), jnp.float32)
    return p


def reference_layer(x_nchw, params):
    """Pure-JAX reference mirroring the PyTorch forward."""
    x = jnp.transpose(x_nchw, (0, 2, 3, 1))
    dn = ("NHWC", "HWIO", "NHWC")
    if "ws" in params:
        sc = lax.conv_general_dilated(
            x, params["ws"][None, None], (1, 1), "VALID", dimension_numbers=dn
        ) + params["bs"]
    else:
        sc = x
    h = lax.conv_general_dilated(
        jax.nn.relu(x), params["w1"], (1, 1), "SAME", dimension_numbers=dn
    ) + params["b1"]
    h = lax.conv_general_dilated(
        jax.nn.relu(h), params["w2"], (1, 1), "SAME", dimension_numbers=dn
    ) + params["b2"]
    return jnp.transpose(h + sc, (0, 3, 1, 2))


if __name__ == "__main__":
    key = jax.random.PRNGKey(0)
    kx1, kp1, kx2, kp2 = jax.random.split(key, 4)

    B, H, W = 2, 16, 16

    # --- projection-shortcut case (Cin != Cout), 2 H-strips per image ---
    Cin, Cout = 4, 8
    x = jax.random.normal(kx1, (B, Cin, H, W), jnp.float32)
    params = init_params(kp1, Cin, Cout)
    ref = jax.block_until_ready(reference_layer(x, params))

    out_f32 = jax.block_until_ready(
        vqgan_layer(x, params, block_h=8, compute_dtype=jnp.float32))
    assert out_f32.shape == (B, Cout, H, W)
    assert jnp.allclose(out_f32, ref, atol=1e-3, rtol=1e-3), \
        "f32 mismatch (projection shortcut)"

    out_bf16 = jax.block_until_ready(vqgan_layer(x, params, block_h=8))
    assert jnp.allclose(out_bf16, ref, atol=5e-2, rtol=5e-2), \
        "bf16 mismatch (projection shortcut)"

    # --- identity-shortcut case (Cin == Cout): no shortcut matmul ---
    C = 8
    x2 = jax.random.normal(kx2, (B, C, H, W), jnp.float32)
    params2 = init_params(kp2, C, C)
    ref2 = jax.block_until_ready(reference_layer(x2, params2))
    out2 = jax.block_until_ready(
        vqgan_layer(x2, params2, block_h=8, compute_dtype=jnp.float32))
    assert jnp.allclose(out2, ref2, atol=1e-3, rtol=1e-3), \
        "f32 mismatch (identity shortcut)"

    print("KERNEL_OK")
</pallas_src>

<mosaic_0001>
module attributes {stable_mosaic.version = 11 : i64} {
  func.func @_vqgan_layer_kernel(%arg0: i32, %arg1: i32, %arg2: memref<1x8x18x4xf32, #tpu.memory_space<vmem>>, %arg3: memref<1x4x18x4xf32, #tpu.memory_space<vmem>>, %arg4: memref<3x12x8xf32, #tpu.memory_space<vmem>>, %arg5: memref<1x8xf32, #tpu.memory_space<vmem>>, %arg6: memref<3x24x8xf32, #tpu.memory_space<vmem>>, %arg7: memref<1x8xf32, #tpu.memory_space<vmem>>, %arg8: memref<4x8xf32, #tpu.memory_space<vmem>>, %arg9: memref<1x8xf32, #tpu.memory_space<vmem>>, %arg10: memref<1x128x8xf32, #tpu.memory_space<vmem>>, %arg11: memref<10x18x8xf32, #tpu.memory_space<vmem>>) attributes {dimension_semantics = [#tpu.dimension_semantics<parallel>, #tpu.dimension_semantics<parallel>], iteration_bounds = array<i64: 2, 2>, scalar_prefetch = 0 : i64, scratch_operands = 1 : i64, tpu.core_type = #tpu.core_type<tc>, window_params = [{transform_indices = @transform_0, window_bounds = array<i64: 1, 8, 18, 4>}, {transform_indices = @transform_1, window_bounds = array<i64: 1, 4, 18, 4>}, {pipeline_mode = #tpu.pipeline_mode<synchronous>, transform_indices = @transform_2, window_bounds = array<i64: 3, 12, 8>}, {pipeline_mode = #tpu.pipeline_mode<synchronous>, transform_indices = @transform_3, window_bounds = array<i64: 1, 8>}, {pipeline_mode = #tpu.pipeline_mode<synchronous>, transform_indices = @transform_4, window_bounds = array<i64: 3, 24, 8>}, {pipeline_mode = #tpu.pipeline_mode<synchronous>, transform_indices = @transform_5, window_bounds = array<i64: 1, 8>}, {pipeline_mode = #tpu.pipeline_mode<synchronous>, transform_indices = @transform_6, window_bounds = array<i64: 4, 8>}, {pipeline_mode = #tpu.pipeline_mode<synchronous>, transform_indices = @transform_7, window_bounds = array<i64: 1, 8>}, {transform_indices = @transform_8, window_bounds = array<i64: 1, 128, 8>}]} {
    %c0 = arith.constant 0 : index
    %c0_0 = arith.constant 0 : index
    %c0_1 = arith.constant 0 : index
    %c0_2 = arith.constant 0 : index
    %0 = vector.load %arg2[%c0, %c0_0, %c0_1, %c0_2] : memref<1x8x18x4xf32, #tpu.memory_space<vmem>>, vector<1x8x18x4xf32>
    %1 = vector.shape_cast %0 : vector<1x8x18x4xf32> to vector<8x18x4xf32>
    %c0_3 = arith.constant 0 : index
    %c0_4 = arith.constant 0 : index
    %c0_5 = arith.constant 0 : index
    %c0_6 = arith.constant 0 : index
    %2 = vector.load %arg3[%c0_3, %c0_4, %c0_5, %c0_6] : memref<1x4x18x4xf32, #tpu.memory_space<vmem>>, vector<1x4x18x4xf32>
    %3 = vector.shape_cast %2 : vector<1x4x18x4xf32> to vector<4x18x4xf32>
    %4 = tpu.concatenate %1, %3 in 0 : vector<8x18x4xf32>, vector<4x18x4xf32> -> vector<12x18x4xf32>
    %cst = arith.constant 0.000000e+00 : f32
    %5 = vector.broadcast %cst : f32 to vector<12x18x4xf32>
    %6 = arith.maximumf %4, %5 : vector<12x18x4xf32>
    %7 = vector.extract_strided_slice %6 {offsets = [0, 0, 0], sizes = [12, 16, 4], strides = [1, 1, 1]} : vector<12x18x4xf32> to vector<12x16x4xf32>
    %8 = vector.extract_strided_slice %6 {offsets = [0, 1, 0], sizes = [12, 16, 4], strides = [1, 1, 1]} : vector<12x18x4xf32> to vector<12x16x4xf32>
    %9 = vector.extract_strided_slice %6 {offsets = [0, 2, 0], sizes = [12, 16, 4], strides = [1, 1, 1]} : vector<12x18x4xf32> to vector<12x16x4xf32>
    %10 = tpu.concatenate %7, %8, %9 in 2 : vector<12x16x4xf32>, vector<12x16x4xf32>, vector<12x16x4xf32> -> vector<12x16x12xf32>
    %11 = vector.shape_cast %10 : vector<12x16x12xf32> to vector<192x12xf32>
    %12 = vector.extract_strided_slice %11 {offsets = [0, 0], sizes = [160, 12], strides = [1, 1]} : vector<192x12xf32> to vector<160x12xf32>
    %c0_7 = arith.constant 0 : index
    %c0_8 = arith.constant 0 : index
    %c0_9 = arith.constant 0 : index
    %13 = vector.load %arg4[%c0_7, %c0_8, %c0_9] : memref<3x12x8xf32, #tpu.memory_space<vmem>>, vector<1x12x8xf32>
    %14 = vector.shape_cast %13 : vector<1x12x8xf32> to vector<12x8xf32>
    %cst_10 = arith.constant dense<0.000000e+00> : vector<160x8xf32>
    %15 = tpu.matmul %12, %14, %cst_10 {dimension_numbers = #tpu.dot_dimension_numbers<[1], [0], [0], [1], [0, 0, 1, 1], [], []>} : vector<160x12xf32>, vector<12x8xf32>, vector<160x8xf32> -> vector<160x8xf32>
    %16 = vector.extract_strided_slice %11 {offsets = [16, 0], sizes = [160, 12], strides = [1, 1]} : vector<192x12xf32> to vector<160x12xf32>
    %c1 = arith.constant 1 : index
    %c0_11 = arith.constant 0 : index
    %c0_12 = arith.constant 0 : index
    %17 = vector.load %arg4[%c1, %c0_11, %c0_12] : memref<3x12x8xf32, #tpu.memory_space<vmem>>, vector<1x12x8xf32>
    %18 = vector.shape_cast %17 : vector<1x12x8xf32> to vector<12x8xf32>
    %cst_13 = arith.constant dense<0.000000e+00> : vector<160x8xf32>
    %19 = tpu.matmul %16, %18, %cst_13 {dimension_numbers = #tpu.dot_dimension_numbers<[1], [0], [0], [1], [0, 0, 1, 1], [], []>} : vector<160x12xf32>, vector<12x8xf32>, vector<160x8xf32> -> vector<160x8xf32>
    %20 = arith.addf %15, %19 : vector<160x8xf32>
    %21 = vector.extract_strided_slice %11 {offsets = [32, 0], sizes = [160, 12], strides = [1, 1]} : vector<192x12xf32> to vector<160x12xf32>
    %c2 = arith.constant 2 : index
    %c0_14 = arith.constant 0 : index
    %c0_15 = arith.constant 0 : index
    %22 = vector.load %arg4[%c2, %c0_14, %c0_15] : memref<3x12x8xf32, #tpu.memory_space<vmem>>, vector<1x12x8xf32>
    %23 = vector.shape_cast %22 : vector<1x12x8xf32> to vector<12x8xf32>
    %cst_16 = arith.constant dense<0.000000e+00> : vector<160x8xf32>
    %24 = tpu.matmul %21, %23, %cst_16 {dimension_numbers = #tpu.dot_dimension_numbers<[1], [0], [0], [1], [0, 0, 1, 1], [], []>} : vector<160x12xf32>, vector<12x8xf32>, vector<160x8xf32> -> vector<160x8xf32>
    %25 = arith.addf %20, %24 : vector<160x8xf32>
    %c0_17 = arith.constant 0 : index
    %c0_18 = arith.constant 0 : index
    %26 = vector.load %arg5[%c0_17, %c0_18] : memref<1x8xf32, #tpu.memory_space<vmem>>, vector<1x8xf32>
    %27 = vector.broadcast %26 : vector<1x8xf32> to vector<160x8xf32>
    %28 = arith.addf %25, %27 : vector<160x8xf32>
    %cst_19 = arith.constant 0.000000e+00 : f32
    %29 = vector.broadcast %cst_19 : f32 to vector<160x8xf32>
    %30 = arith.maximumf %28, %29 : vector<160x8xf32>
    %31 = vector.shape_cast %30 : vector<160x8xf32> to vector<10x16x8xf32>
    %c0_20 = arith.constant 0 : index
    %c1_21 = arith.constant 1 : index
    %c0_22 = arith.constant 0 : index
    %32 = vector.load %arg11[%c0_20, %c1_21, %c0_22] : memref<10x18x8xf32, #tpu.memory_space<vmem>>, vector<10x16x8xf32>
    tpu.vector_store %arg11[%c0_20, %c1_21, %c0_22], %31 {strides = array<i32>} : memref<10x18x8xf32, #tpu.memory_space<vmem>>, vector<10x16x8xf32>,
    %cst_23 = arith.constant 0.000000e+00 : f32
    %33 = vector.broadcast %cst_23 : f32 to vector<10x1x8xf32>
    %c0_24 = arith.constant 0 : index
    %c0_25 = arith.constant 0 : index
    %c0_26 = arith.constant 0 : index
    %34 = vector.load %arg11[%c0_24, %c0_25, %c0_26] : memref<10x18x8xf32, #tpu.memory_space<vmem>>, vector<10x1x8xf32>
    tpu.vector_store %arg11[%c0_24, %c0_25, %c0_26], %33 {strides = array<i32>} : memref<10x18x8xf32, #tpu.memory_space<vmem>>, vector<10x1x8xf32>,
    %c0_27 = arith.constant 0 : index
    %c17 = arith.constant 17 : index
    %c0_28 = arith.constant 0 : index
    %35 = vector.load %arg11[%c0_27, %c17, %c0_28] : memref<10x18x8xf32, #tpu.memory_space<vmem>>, vector<10x1x8xf32>
    tpu.vector_store %arg11[%c0_27, %c17, %c0_28], %33 {strides = array<i32>} : memref<10x18x8xf32, #tpu.memory_space<vmem>>, vector<10x1x8xf32>,
    %c0_i32 = arith.constant 0 : i32
    %36 = arith.cmpi eq, %arg1, %c0_i32 : i32
    %37 = arith.extui %36 : i1 to i32
    %c0_i32_29 = arith.constant 0 : i32
    %38 = arith.cmpi ne, %37, %c0_i32_29 : i32
    scf.if %38 {
      %cst_56 = arith.constant 0.000000e+00 : f32
      %76 = vector.broadcast %cst_56 : f32 to vector<1x18x8xf32>
      %c0_57 = arith.constant 0 : index
      %c0_58 = arith.constant 0 : index
      %c0_59 = arith.constant 0 : index
      %77 = vector.load %arg11[%c0_57, %c0_58, %c0_59] : memref<10x18x8xf32, #tpu.memory_space<vmem>>, vector<1x18x8xf32>
      tpu.vector_store %arg11[%c0_57, %c0_58, %c0_59], %76 {strides = array<i32>} : memref<10x18x8xf32, #tpu.memory_space<vmem>>, vector<1x18x8xf32>,
    } else {
    }
    %c1_i32 = arith.constant 1 : i32
    %39 = arith.cmpi eq, %arg1, %c1_i32 : i32
    %40 = arith.extui %39 : i1 to i32
    %c0_i32_30 = arith.constant 0 : i32
    %41 = arith.cmpi ne, %40, %c0_i32_30 : i32
    scf.if %41 {
      %cst_56 = arith.constant 0.000000e+00 : f32
      %76 = vector.broadcast %cst_56 : f32 to vector<1x18x8xf32>
      %c9 = arith.constant 9 : index
      %c0_57 = arith.constant 0 : index
      %c0_58 = arith.constant 0 : index
      %77 = vector.load %arg11[%c9, %c0_57, %c0_58] : memref<10x18x8xf32, #tpu.memory_space<vmem>>, vector<1x18x8xf32>
      tpu.vector_store %arg11[%c9, %c0_57, %c0_58], %76 {strides = array<i32>} : memref<10x18x8xf32, #tpu.memory_space<vmem>>, vector<1x18x8xf32>,
    } else {
    }
    %42 = vector.extract_strided_slice %4 {offsets = [2, 1, 0], sizes = [8, 16, 4], strides = [1, 1, 1]} : vector<12x18x4xf32> to vector<8x16x4xf32>
    %43 = vector.shape_cast %42 : vector<8x16x4xf32> to vector<128x4xf32>
    %c0_31 = arith.constant 0 : index
    %c0_32 = arith.constant 0 : index
    %44 = vector.load %arg8[%c0_31, %c0_32] : memref<4x8xf32, #tpu.memory_space<vmem>>, vector<4x8xf32>
    %cst_33 = arith.constant dense<0.000000e+00> : vector<128x8xf32>
    %45 = tpu.matmul %43, %44, %cst_33 {dimension_numbers = #tpu.dot_dimension_numbers<[1], [0], [0], [1], [0, 0, 1, 1], [], []>} : vector<128x4xf32>, vector<4x8xf32>, vector<128x8xf32> -> vector<128x8xf32>
    %c0_34 = arith.constant 0 : index
    %c0_35 = arith.constant 0 : index
    %46 = vector.load %arg9[%c0_34, %c0_35] : memref<1x8xf32, #tpu.memory_space<vmem>>, vector<1x8xf32>
    %47 = vector.broadcast %46 : vector<1x8xf32> to vector<128x8xf32>
    %48 = arith.addf %45, %47 : vector<128x8xf32>
    %c0_36 = arith.constant 0 : index
    %c0_37 = arith.constant 0 : index
    %c0_38 = arith.constant 0 : index
    %49 = vector.load %arg11[%c0_36, %c0_37, %c0_38] : memref<10x18x8xf32, #tpu.memory_space<vmem>>, vector<10x18x8xf32>
    %50 = vector.extract_strided_slice %49 {offsets = [0, 0, 0], sizes = [10, 16, 8], strides = [1, 1, 1]} : vector<10x18x8xf32> to vector<10x16x8xf32>
    %51 = vector.extract_strided_slice %49 {offsets = [0, 1, 0], sizes = [10, 16, 8], strides = [1, 1, 1]} : vector<10x18x8xf32> to vector<10x16x8xf32>
    %52 = vector.extract_strided_slice %49 {offsets = [0, 2, 0], sizes = [10, 16, 8], strides = [1, 1, 1]} : vector<10x18x8xf32> to vector<10x16x8xf32>
    %53 = tpu.concatenate %50, %51, %52 in 2 : vector<10x16x8xf32>, vector<10x16x8xf32>, vector<10x16x8xf32> -> vector<10x16x24xf32>
    %54 = vector.shape_cast %53 : vector<10x16x24xf32> to vector<160x24xf32>
    %55 = vector.extract_strided_slice %54 {offsets = [0, 0], sizes = [128, 24], strides = [1, 1]} : vector<160x24xf32> to vector<128x24xf32>
    %c0_39 = arith.constant 0 : index
    %c0_40 = arith.constant 0 : index
    %c0_41 = arith.constant 0 : index
    %56 = vector.load %arg6[%c0_39, %c0_40, %c0_41] : memref<3x24x8xf32, #tpu.memory_space<vmem>>, vector<1x24x8xf32>
    %57 = vector.shape_cast %56 : vector<1x24x8xf32> to vector<24x8xf32>
    %cst_42 = arith.constant dense<0.000000e+00> : vector<128x8xf32>
    %58 = tpu.matmul %55, %57, %cst_42 {dimension_numbers = #tpu.dot_dimension_numbers<[1], [0], [0], [1], [0, 0, 1, 1], [], []>} : vector<128x24xf32>, vector<24x8xf32>, vector<128x8xf32> -> vector<128x8xf32>
    %59 = arith.addf %48, %58 : vector<128x8xf32>
    %60 = vector.extract_strided_slice %54 {offsets = [16, 0], sizes = [128, 24], strides = [1, 1]} : vector<160x24xf32> to vector<128x24xf32>
    %c1_43 = arith.constant 1 : index
    %c0_44 = arith.constant 0 : index
    %c0_45 = arith.constant 0 : index
    %61 = vector.load %arg6[%c1_43, %c0_44, %c0_45] : memref<3x24x8xf32, #tpu.memory_space<vmem>>, vector<1x24x8xf32>
    %62 = vector.shape_cast %61 : vector<1x24x8xf32> to vector<24x8xf32>
    %cst_46 = arith.constant dense<0.000000e+00> : vector<128x8xf32>
    %63 = tpu.matmul %60, %62, %cst_46 {dimension_numbers = #tpu.dot_dimension_numbers<[1], [0], [0], [1], [0, 0, 1, 1], [], []>} : vector<128x24xf32>, vector<24x8xf32>, vector<128x8xf32> -> vector<128x8xf32>
    %64 = arith.addf %59, %63 : vector<128x8xf32>
    %65 = vector.extract_strided_slice %54 {offsets = [32, 0], sizes = [128, 24], strides = [1, 1]} : vector<160x24xf32> to vector<128x24xf32>
    %c2_47 = arith.constant 2 : index
    %c0_48 = arith.constant 0 : index
    %c0_49 = arith.constant 0 : index
    %66 = vector.load %arg6[%c2_47, %c0_48, %c0_49] : memref<3x24x8xf32, #tpu.memory_space<vmem>>, vector<1x24x8xf32>
    %67 = vector.shape_cast %66 : vector<1x24x8xf32> to vector<24x8xf32>
    %cst_50 = arith.constant dense<0.000000e+00> : vector<128x8xf32>
    %68 = tpu.matmul %65, %67, %cst_50 {dimension_numbers = #tpu.dot_dimension_numbers<[1], [0], [0], [1], [0, 0, 1, 1], [], []>} : vector<128x24xf32>, vector<24x8xf32>, vector<128x8xf32> -> vector<128x8xf32>
    %69 = arith.addf %64, %68 : vector<128x8xf32>
    %c0_51 = arith.constant 0 : index
    %c0_52 = arith.constant 0 : index
    %70 = vector.load %arg7[%c0_51, %c0_52] : memref<1x8xf32, #tpu.memory_space<vmem>>, vector<1x8xf32>
    %71 = vector.broadcast %70 : vector<1x8xf32> to vector<128x8xf32>
    %72 = arith.addf %69, %71 : vector<128x8xf32>
    %c0_53 = arith.constant 0 : index
    %c0_54 = arith.constant 0 : index
    %c0_55 = arith.constant 0 : index
    %73 = vector.load %arg10[%c0_53, %c0_54, %c0_55] : memref<1x128x8xf32, #tpu.memory_space<vmem>>, vector<1x128x8xf32>
    %74 = vector.shape_cast %73 : vector<1x128x8xf32> to vector<128x8xf32>
    %75 = vector.shape_cast %72 : vector<128x8xf32> to vector<1x128x8xf32>
    tpu.vector_store %arg10[%c0_53, %c0_54, %c0_55], %75 {strides = array<i32>} : memref<1x128x8xf32, #tpu.memory_space<vmem>>, vector<1x128x8xf32>,
    return
  }
  func.func @transform_0(%arg0: i32, %arg1: i32) -> (i32, i32, i32, i32) {
    %c0_i32 = arith.constant 0 : i32
    %c0_i32_0 = arith.constant 0 : i32
    %c0_i32_1 = arith.constant 0 : i32
    return %arg0, %arg1, %c0_i32, %c0_i32_0 : i32, i32, i32, i32
  }
  func.func @transform_1(%arg0: i32, %arg1: i32) -> (i32, i32, i32, i32) {
    %c1_i32 = arith.constant 1 : i32
    %0 = arith.addi %arg1, %c1_i32 : i32
    %c2_i32 = arith.constant 2 : i32
    %1 = arith.muli %0, %c2_i32 : i32
    %c0_i32 = arith.constant 0 : i32
    %c0_i32_0 = arith.constant 0 : i32
    %c0_i32_1 = arith.constant 0 : i32
    return %arg0, %1, %c0_i32, %c0_i32_0 : i32, i32, i32, i32
  }
  func.func @transform_2(%arg0: i32, %arg1: i32) -> (i32, i32, i32) {
    %c0_i32 = arith.constant 0 : i32
    %c0_i32_0 = arith.constant 0 : i32
    %c0_i32_1 = arith.constant 0 : i32
    %c0_i32_2 = arith.constant 0 : i32
    return %c0_i32, %c0_i32_0, %c0_i32_1 : i32, i32, i32
  }
  func.func @transform_3(%arg0: i32, %arg1: i32) -> (i32, i32) {
    %c0_i32 = arith.constant 0 : i32
    %c0_i32_0 = arith.constant 0 : i32
    %c0_i32_1 = arith.constant 0 : i32
    return %c0_i32, %c0_i32_0 : i32, i32
  }
  func.func @transform_4(%arg0: i32, %arg1: i32) -> (i32, i32, i32) {
    %c0_i32 = arith.constant 0 : i32
    %c0_i32_0 = arith.constant 0 : i32
    %c0_i32_1 = arith.constant 0 : i32
    %c0_i32_2 = arith.constant 0 : i32
    return %c0_i32, %c0_i32_0, %c0_i32_1 : i32, i32, i32
  }
  func.func @transform_5(%arg0: i32, %arg1: i32) -> (i32, i32) {
    %c0_i32 = arith.constant 0 : i32
    %c0_i32_0 = arith.constant 0 : i32
    %c0_i32_1 = arith.constant 0 : i32
    return %c0_i32, %c0_i32_0 : i32, i32
  }
  func.func @transform_6(%arg0: i32, %arg1: i32) -> (i32, i32) {
    %c0_i32 = arith.constant 0 : i32
    %c0_i32_0 = arith.constant 0 : i32
    %c0_i32_1 = arith.constant 0 : i32
    return %c0_i32, %c0_i32_0 : i32, i32
  }
  func.func @transform_7(%arg0: i32, %arg1: i32) -> (i32, i32) {
    %c0_i32 = arith.constant 0 : i32
    %c0_i32_0 = arith.constant 0 : i32
    %c0_i32_1 = arith.constant 0 : i32
    return %c0_i32, %c0_i32_0 : i32, i32
  }
  func.func @transform_8(%arg0: i32, %arg1: i32) -> (i32, i32, i32) {
    %c0_i32 = arith.constant 0 : i32
    %c0_i32_0 = arith.constant 0 : i32
    return %arg0, %arg1, %c0_i32 : i32, i32, i32
  }
}

</mosaic_0001>

<llo_original>
// kernel: tpu_custom_call.1
$region0: #{tpu_custom_call.1}
  #allocation0 [shape = 'u32[]', space=smem, size = 0x4, offset = 0x4, fixed_abs, tag = 'smem constant byte address 0x4 - core index']
  #allocation1 [shape = 'u32[144,128]{1,0:T(1,128)}', space=vmem, size = 0x12000, scoped, tag = 'internal scratch']
  #allocation2 [shape = 'f32[10,18,8]{2,1,0:T(8,128)}', space=vmem, size = 0x1e000, scoped, tag = 'scratch operand']
  %s0 = inlined_call_operand.vmem [shape: f32[2,20,18,4], index: 0, kind: input, shape index: {}]
  %s1 = inlined_call_operand.vmem [shape: f32[2,20,18,4], index: 1, kind: input, shape index: {}]
  %s2 = inlined_call_operand.vmem [shape: f32[3,12,8], index: 2, kind: input, shape index: {}]
  %s3 = inlined_call_operand.vmem [shape: f32[1,8], index: 3, kind: input, shape index: {}]
  %s4 = inlined_call_operand.vmem [shape: f32[3,24,8], index: 4, kind: input, shape index: {}]
  %s5 = inlined_call_operand.vmem [shape: f32[1,8], index: 5, kind: input, shape index: {}]
  %s6 = inlined_call_operand.vmem [shape: f32[4,8], index: 6, kind: input, shape index: {}]
  %s7 = inlined_call_operand.vmem [shape: f32[1,8], index: 7, kind: input, shape index: {}]
  %s8 = inlined_call_operand.vmem [shape: f32[2,256,8], index: 8, kind: output, shape index: {}]
  %s9 = sld [smem:[#allocation0]]
  $region73: #{tpu_custom_call.1} parent=0
    _
  %s11 = ssub.s32 1, %s9
  %s12 = scalar_select 0, %s11, %s9
  loop: start=0, step=1, limit=6
  $region2: #{tpu_custom_call.1} parent=0 // loop_pre_header
    _
  $region3: #{tpu_custom_call.1} parent=0 // loop_header
    %s14 = sphi 0, %s18
    %p15 = scmp.ge.s32.totalorder %s14, 6
    %s21 = sphi 0, %s33
    %s22 = sphi 0, %s29
    %s23 = sphi 0, %s21
    %s24 = sphi 0, %s22
    %s25 = sphi 0, %s23
    %s26 = sphi 0, %s24
    %s38 = sphi 0, %s40
    %s41 = sphi 0, %s38
    %s42 = sphi 0, %s41
    %s58 = sphi 0, %s42
    %s70 = sphi 0, %s72
    %s73 = sphi 0, %s70
    %s74 = sphi 0, %s73
    %s90 = sphi 0, %s74
    %s94 = sphi 0, %s94
    %s96 = sphi 0, %s94
    %s97 = sphi 0, %s96
    %s111 = sphi 0, %s97
    %s115 = sphi 0, %s115
    %s117 = sphi 0, %s115
    %s118 = sphi 0, %s117
    %s132 = sphi 0, %s118
    %s136 = sphi 0, %s136
    %s138 = sphi 0, %s136
    %s139 = sphi 0, %s138
    %s153 = sphi 0, %s139
    %s157 = sphi 0, %s157
    %s159 = sphi 0, %s157
    %s160 = sphi 0, %s159
    %s174 = sphi 0, %s160
    %s178 = sphi 0, %s178
    %s180 = sphi 0, %s178
    %s181 = sphi 0, %s180
    %s195 = sphi 0, %s181
    %s199 = sphi 0, %s199
    %s201 = sphi 0, %s199
    %s202 = sphi 0, %s201
    %s216 = sphi 0, %s202
    %s224 = sphi 0, %s226
    %s227 = sphi 0, %s224
    %s228 = sphi 0, %s227
    %s244 = sphi 0, %s228
  $region4: #{tpu_custom_call.1} parent=0 // loop_header_branch
    %17 = sbr.rel (%p15) target = $region8
  $region5: #{tpu_custom_call.1} parent=0 // loop_body
    %s19 = ssub.s32 %s14, 1
    %s20 = ssub.s32 %s14, 2
    %s27 = sadd.s32 1, %s22
    %p28 = scmp.ge.s32.totalorder %s27, 2
    %s29 = scalar_select %p28, 0, %s27
    %s30 = sadd.s32 1, %s21
    %s31 = scalar_select %p28, %s30, %s21
    %p32 = scmp.ge.s32.totalorder %s31, 2
    %s33 = scalar_select %p32, 0, %s31
    %s34 = ssub.s32 %s21, %s33
    %s35 = ssub.s32 %s22, %s29
    %s36 = sor.u32 %s34, %s35
    %p37 = scmp.eq.s32.totalorder %s36, 0
    %s39 = sadd.s32 %s38, 1
    %s40 = scalar_select %p37, %s38, %s39
    %p43 = pneg %p37
    %p44 = scmp.eq.s32.totalorder %s14, 3
    %p45 = por %p43, %p44
    %p46 = scmp.ne.s32.totalorder %s38, %s41
    %p47 = scmp.eq.s32.totalorder %s14, 0
    %p48 = por %p46, %p47
    %p49 = scmp.ne.s32.totalorder %s38, %s41
    %p50 = scmp.eq.s32.totalorder %s19, 3
    %p51 = por %p49, %p50
    %p52 = scmp.ne.s32.totalorder %s41, %s42
    %p53 = scmp.eq.s32.totalorder %s19, 0
    %p54 = por %p52, %p53
    %p55 = scmp.ne.s32.totalorder %s41, %s42
    %p56 = scmp.eq.s32.totalorder %s20, 3
    %p57 = por %p55, %p56
    %p59 = scmp.ne.s32.totalorder %s42, %s58
    %p60 = scmp.eq.s32.totalorder %s20, 0
    %p61 = por %p59, %p60
    %s62 = sadd.s32 %s22, 1
    %s63 = smul.u32 %s62, 2
    %s64 = sadd.s32 %s29, 1
    %s65 = smul.u32 %s64, 2
    %s66 = ssub.s32 %s21, %s33
    %s67 = ssub.s32 %s63, %s65
    %s68 = sor.u32 %s66, %s67
    %p69 = scmp.eq.s32.totalorder %s68, 0
    %s71 = sadd.s32 %s70, 1
    %s72 = scalar_select %p69, %s70, %s71
    %p75 = pneg %p69
    %p76 = scmp.eq.s32.totalorder %s14, 3
    %p77 = por %p75, %p76
    %p78 = scmp.ne.s32.totalorder %s70, %s73
    %p79 = scmp.eq.s32.totalorder %s14, 0
    %p80 = por %p78, %p79
    %p81 = scmp.ne.s32.totalorder %s70, %s73
    %p82 = scmp.eq.s32.totalorder %s19, 3
    %p83 = por %p81, %p82
    %p84 = scmp.ne.s32.totalorder %s73, %s74
    %p85 = scmp.eq.s32.totalorder %s19, 0
    %p86 = por %p84, %p85
    %p87 = scmp.ne.s32.totalorder %s73, %s74
    %p88 = scmp.eq.s32.totalorder %s20, 3
    %p89 = por %p87, %p88
    %p91 = scmp.ne.s32.totalorder %s74, %s90
    %p92 = scmp.eq.s32.totalorder %s20, 0
    %p93 = por %p91, %p92
    %s95 = sadd.s32 %s94, 1
    %p98 = scmp.eq.s32.totalorder %s14, 3
    %p99 = scmp.ne.s32.totalorder %s94, %s96
    %p100 = scmp.eq.s32.totalorder %s14, 0
    %p101 = por %p99, %p100
    %p102 = scmp.ne.s32.totalorder %s94, %s96
    %p103 = scmp.eq.s32.totalorder %s19, 3
    %p104 = por %p102, %p103
    %p105 = scmp.ne.s32.totalorder %s96, %s97
    %p106 = scmp.eq.s32.totalorder %s19, 0
    %p107 = por %p105, %p106
    %p108 = scmp.ne.s32.totalorder %s96, %s97
    %p109 = scmp.eq.s32.totalorder %s20, 3
    %p110 = por %p108, %p109
    %p112 = scmp.ne.s32.totalorder %s97, %s111
    %p113 = scmp.eq.s32.totalorder %s20, 0
    %p114 = por %p112, %p113
    %s116 = sadd.s32 %s115, 1
    %p119 = scmp.eq.s32.totalorder %s14, 3
    %p120 = scmp.ne.s32.totalorder %s115, %s117
    %p121 = scmp.eq.s32.totalorder %s14, 0
    %p122 = por %p120, %p121
    %p123 = scmp.ne.s32.totalorder %s115, %s117
    %p124 = scmp.eq.s32.totalorder %s19, 3
    %p125 = por %p123, %p124
    %p126 = scmp.ne.s32.totalorder %s117, %s118
    %p127 = scmp.eq.s32.totalorder %s19, 0
    %p128 = por %p126, %p127
    %p129 = scmp.ne.s32.totalorder %s117, %s118
    %p130 = scmp.eq.s32.totalorder %s20, 3
    %p131 = por %p129, %p130
    %p133 = scmp.ne.s32.totalorder %s118, %s132
    %p134 = scmp.eq.s32.totalorder %s20, 0
    %p135 = por %p133, %p134
    %s137 = sadd.s32 %s136, 1
    %p140 = scmp.eq.s32.totalorder %s14, 3
    %p141 = scmp.ne.s32.totalorder %s136, %s138
    %p142 = scmp.eq.s32.totalorder %s14, 0
    %p143 = por %p141, %p142
    %p144 = scmp.ne.s32.totalorder %s136, %s138
    %p145 = scmp.eq.s32.totalorder %s19, 3
    %p146 = por %p144, %p145
    %p147 = scmp.ne.s32.totalorder %s138, %s139
    %p148 = scmp.eq.s32.totalorder %s19, 0
    %p149 = por %p147, %p148
    %p150 = scmp.ne.s32.totalorder %s138, %s139
    %p151 = scmp.eq.s32.totalorder %s20, 3
    %p152 = por %p150, %p151
    %p154 = scmp.ne.s32.totalorder %s139, %s153
    %p155 = scmp.eq.s32.totalorder %s20, 0
    %p156 = por %p154, %p155
    %s158 = sadd.s32 %s157, 1
    %p161 = scmp.eq.s32.totalorder %s14, 3
    %p162 = scmp.ne.s32.totalorder %s157, %s159
    %p163 = scmp.eq.s32.totalorder %s14, 0
    %p164 = por %p162, %p163
    %p165 = scmp.ne.s32.totalorder %s157, %s159
    %p166 = scmp.eq.s32.totalorder %s19, 3
    %p167 = por %p165, %p166
    %p168 = scmp.ne.s32.totalorder %s159, %s160
    %p169 = scmp.eq.s32.totalorder %s19, 0
    %p170 = por %p168, %p169
    %p171 = scmp.ne.s32.totalorder %s159, %s160
    %p172 = scmp.eq.s32.totalorder %s20, 3
    %p173 = por %p171, %p172
    %p175 = scmp.ne.s32.totalorder %s160, %s174
    %p176 = scmp.eq.s32.totalorder %s20, 0
    %p177 = por %p175, %p176
    %s179 = sadd.s32 %s178, 1
    %p182 = scmp.eq.s32.totalorder %s14, 3
    %p183 = scmp.ne.s32.totalorder %s178, %s180
    %p184 = scmp.eq.s32.totalorder %s14, 0
    %p185 = por %p183, %p184
    %p186 = scmp.ne.s32.totalorder %s178, %s180
    %p187 = scmp.eq.s32.totalorder %s19, 3
    %p188 = por %p186, %p187
    %p189 = scmp.ne.s32.totalorder %s180, %s181
    %p190 = scmp.eq.s32.totalorder %s19, 0
    %p191 = por %p189, %p190
    %p192 = scmp.ne.s32.totalorder %s180, %s181
    %p193 = scmp.eq.s32.totalorder %s20, 3
    %p194 = por %p192, %p193
    %p196 = scmp.ne.s32.totalorder %s181, %s195
    %p197 = scmp.eq.s32.totalorder %s20, 0
    %p198 = por %p196, %p197
    %s200 = sadd.s32 %s199, 1
    %p203 = scmp.eq.s32.totalorder %s14, 3
    %p204 = scmp.ne.s32.totalorder %s199, %s201
    %p205 = scmp.eq.s32.totalorder %s14, 0
    %p206 = por %p204, %p205
    %p207 = scmp.ne.s32.totalorder %s199, %s201
    %p208 = scmp.eq.s32.totalorder %s19, 3
    %p209 = por %p207, %p208
    %p210 = scmp.ne.s32.totalorder %s201, %s202
    %p211 = scmp.eq.s32.totalorder %s19, 0
    %p212 = por %p210, %p211
    %p213 = scmp.ne.s32.totalorder %s201, %s202
    %p214 = scmp.eq.s32.totalorder %s20, 3
    %p215 = por %p213, %p214
    %p217 = scmp.ne.s32.totalorder %s202, %s216
    %p218 = scmp.eq.s32.totalorder %s20, 0
    %p219 = por %p217, %p218
    %s220 = ssub.s32 %s21, %s33
    %s221 = ssub.s32 %s22, %s29
    %s222 = sor.u32 %s220, %s221
    %p223 = scmp.eq.s32.totalorder %s222, 0
    %s225 = sadd.s32 %s224, 1
    %s226 = scalar_select %p223, %s224, %s225
    %p229 = pneg %p223
    %p230 = scmp.eq.s32.totalorder %s14, 3
    %p231 = por %p229, %p230
    %p232 = scmp.ne.s32.totalorder %s224, %s227
    %p233 = scmp.eq.s32.totalorder %s14, 0
    %p234 = por %p232, %p233
    %p235 = scmp.ne.s32.totalorder %s224, %s227
    %p236 = scmp.eq.s32.totalorder %s19, 3
    %p237 = por %p235, %p236
    %p238 = scmp.ne.s32.totalorder %s227, %s228
    %p239 = scmp.eq.s32.totalorder %s19, 0
    %p240 = por %p238, %p239
    %p241 = scmp.ne.s32.totalorder %s227, %s228
    %p242 = scmp.eq.s32.totalorder %s20, 3
    %p243 = por %p241, %p242
    %p245 = scmp.ne.s32.totalorder %s228, %s244
    %p246 = scmp.eq.s32.totalorder %s20, 0
    %p247 = por %p245, %p246
    %p248 = scmp.le.s32.totalorder 1, %s14
    %p249 = scmp.lt.s32.totalorder %s14, 5
    %p250 = pnand %p248, %p249
    %p251 = pneg %p250
    // Predicated region
    $region9: #{tpu_custom_call.1} parent=5 // pred_check
      _
    $region10: #{tpu_custom_call.1} parent=5 // pred_check_branch
      %253 = sbr.rel (%p250) target = $region12
    $region11: #{tpu_custom_call.1} parent=5 // pred_region
      %s254 = ssub.s32 %s14, 1
      // Predicated region
      $region13: #{tpu_custom_call.1} parent=11 // pred_check
        %p255 = pneg %p107
      $region14: #{tpu_custom_call.1} parent=11 // pred_check_branch
        %257 = sbr.rel (%p255) target = $region16
      $region15: #{tpu_custom_call.1} parent=11 // pred_region
        _
      $region16: #{tpu_custom_call.1} parent=11 // pred_fallthru
        _
      // Predicated region
      $region17: #{tpu_custom_call.1} parent=11 // pred_check
        %p258 = pneg %p128
      $region18: #{tpu_custom_call.1} parent=11 // pred_check_branch
        %260 = sbr.rel (%p258) target = $region20
      $region19: #{tpu_custom_call.1} parent=11 // pred_region
        _
      $region20: #{tpu_custom_call.1} parent=11 // pred_fallthru
        _
      // Predicated region
      $region21: #{tpu_custom_call.1} parent=11 // pred_check
        %p261 = pneg %p149
      $region22: #{tpu_custom_call.1} parent=11 // pred_check_branch
        %263 = sbr.rel (%p261) target = $region24
      $region23: #{tpu_custom_call.1} parent=11 // pred_region
        _
      $region24: #{tpu_custom_call.1} parent=11 // pred_fallthru
        _
      // Predicated region
      $region25: #{tpu_custom_call.1} parent=11 // pred_check
        %p264 = pneg %p170
      $region26: #{tpu_custom_call.1} parent=11 // pred_check_branch
        %266 = sbr.rel (%p264) target = $region28
      $region27: #{tpu_custom_call.1} parent=11 // pred_region
        _
      $region28: #{tpu_custom_call.1} parent=11 // pred_fallthru
        _
      // Predicated region
      $region29: #{tpu_custom_call.1} parent=11 // pred_check
        %p267 = pneg %p191
      $region30: #{tpu_custom_call.1} parent=11 // pred_check_branch
        %269 = sbr.rel (%p267) target = $region32
      $region31: #{tpu_custom_call.1} parent=11 // pred_region
        _
      $region32: #{tpu_custom_call.1} parent=11 // pred_fallthru
        _
      // Predicated region
      $region33: #{tpu_custom_call.1} parent=11 // pred_check
        %p270 = pneg %p212
      $region34: #{tpu_custom_call.1} parent=11 // pred_check_branch
        %272 = sbr.rel (%p270) target = $region36
      $region35: #{tpu_custom_call.1} parent=11 // pred_region
        _
      $region36: #{tpu_custom_call.1} parent=11 // pred_fallthru
        _
    $region12: #{tpu_custom_call.1} parent=5 // pred_fallthru
      _
    %p273 = scmp.lt.s32.totalorder %s14, 4
    // Predicated region
    $region37: #{tpu_custom_call.1} parent=5 // pred_check
      %p274 = pneg %p273
    $region38: #{tpu_custom_call.1} parent=5 // pred_check_branch
      %276 = sbr.rel (%p274) target = $region40
    $region39: #{tpu_custom_call.1} parent=5 // pred_region
      // Predicated region
      $region41: #{tpu_custom_call.1} parent=39 // pred_check
        %p277 = pneg %p48
      $region42: #{tpu_custom_call.1} parent=39 // pred_check_branch
        %279 = sbr.rel (%p277) target = $region44
      $region43: #{tpu_custom_call.1} parent=39 // pred_region
        %s280 = smul.u32 8, %s22
        %s281 = ssub.s32 20, %s280
        %p282 = scmp.lt.s32.totalorder %s281, 8
        %s283 = scalar_select %p282, %s281, 8
        %s284 = smul.u32 128, %s283
        %s285 = smul.u32 %s284, 3
        %p286 = scmp.lt.s32.totalorder %s21, 1
        %s287 = scalar_select %p286, %s21, 1
        %p288 = scmp.lt.s32.totalorder %s280, 19
        %s289 = scalar_select %p288, %s280, 19
        %s290 = smul.addr %s289, 3
        %s291 = smul.addr %s287, 60
        %s292 = sadd.s32 %s290, %s291
        %s293 = smul.addr %s292, 8
        %s294 = scalar_lea.vmem %s0, %s293
        %s295 = smul.u32 8, %s22
        %s296 = ssub.s32 20, %s295
        %p297 = scmp.lt.s32.totalorder %s296, 8
        %s298 = scalar_select %p297, %s296, 8
        %s299 = smul.u32 128, %s298
        %s300 = smul.u32 %s299, 3
      $region44: #{tpu_custom_call.1} parent=39 // pred_fallthru
        _
      // Predicated region
      $region45: #{tpu_custom_call.1} parent=39 // pred_check
        %p301 = pneg %p80
      $region46: #{tpu_custom_call.1} parent=39 // pred_check_branch
        %303 = sbr.rel (%p301) target = $region48
      $region47: #{tpu_custom_call.1} parent=39 // pred_region
        %s304 = sadd.s32 %s22, 1
        %s305 = smul.u32 %s304, 2
        %s306 = smul.u32 4, %s305
        %p307 = scmp.lt.s32.totalorder %s21, 1
        %s308 = scalar_select %p307, %s21, 1
        %p309 = scmp.lt.s32.totalorder %s306, 19
        %s310 = scalar_select %p309, %s306, 19
        %s311 = smul.addr %s310, 3
        %s312 = smul.addr %s308, 60
        %s313 = sadd.s32 %s311, %s312
        %s314 = smul.addr %s313, 8
        %s315 = scalar_lea.vmem %s1, %s314
        %s316 = sadd.s32 %s22, 1
        %s317 = smul.u32 %s316, 2
        %s318 = smul.u32 4, %s317
      $region48: #{tpu_custom_call.1} parent=39 // pred_fallthru
        _
    $region40: #{tpu_custom_call.1} parent=5 // pred_fallthru
      _
    %p319 = scmp.le.s32.totalorder 1, %s14
    %p320 = scmp.lt.s32.totalorder %s14, 5
    %p321 = pnand %p319, %p320
    %p322 = pneg %p321
    // Predicated region
    $region49: #{tpu_custom_call.1} parent=5 // pred_check
      _
    $region50: #{tpu_custom_call.1} parent=5 // pred_check_branch
      %324 = sbr.rel (%p321) target = $region52
    $region51: #{tpu_custom_call.1} parent=5 // pred_region
      %s325 = ssub.s32 %s14, 1
      %s326 = smul.u32 8, %s24
      %s327 = ssub.s32 20, %s326
      %p328 = scmp.lt.s32.totalorder %s327, 8
      %s329 = scalar_select %p328, %s327, 8
      %s330 = smul.u32 128, %s329
      %s331 = smul.u32 %s330, 3
      %p332 = scmp.lt.s32.totalorder %s23, 1
      %s333 = scalar_select %p332, %s23, 1
      %p334 = scmp.lt.s32.totalorder %s326, 19
      %s335 = scalar_select %p334, %s326, 19
      %s336 = smul.addr %s335, 3
      %s337 = smul.addr %s333, 60
      %s338 = sadd.s32 %s336, %s337
      %s339 = smul.addr %s338, 8
      %s340 = scalar_lea.vmem %s0, %s339
      %p341 = pneg %p54
      %p342 = pneg %p51
      %s343 = sadd.s32 %s24, 1
      %s344 = smul.u32 %s343, 2
      %s345 = smul.u32 4, %s344
      %p346 = scmp.lt.s32.totalorder %s23, 1
      %s347 = scalar_select %p346, %s23, 1
      %p348 = scmp.lt.s32.totalorder %s345, 19
      %s349 = scalar_select %p348, %s345, 19
      %s350 = smul.addr %s349, 3
      %s351 = smul.addr %s347, 60
      %s352 = sadd.s32 %s350, %s351
      %s353 = smul.addr %s352, 8
      %s354 = scalar_lea.vmem %s1, %s353
      %p355 = pneg %p86
      %p356 = pneg %p83
      %p357 = pneg %p107
      %p358 = pneg %p104
      %p359 = pneg %p128
      %p360 = pneg %p125
      %p361 = pneg %p149
      %p362 = pneg %p146
      %p363 = pneg %p170
      %p364 = pneg %p167
      %p365 = pneg %p191
      %p366 = pneg %p188
      %p367 = pneg %p212
      %p368 = pneg %p209
      %p369 = pneg %p240
      %p370 = pneg %p237
      %s371 = smul.u32 16, %s24
      %p372 = scmp.lt.s32.totalorder %s23, 1
      %s373 = scalar_select %p372, %s23, 1
      %p374 = scmp.lt.s32.totalorder %s371, 31
      %s375 = scalar_select %p374, %s371, 31
      %s376 = smul.addr %s373, 32
      %s377 = sadd.s32 %s375, %s376
      %s378 = smul.addr %s377, 8
      %s379 = scalar_lea.vmem %s8, %s378
      %s380 = smul.u32 8, %s24
      %s381 = ssub.s32 20, %s380
      %p382 = scmp.lt.s32.totalorder %s381, 8
      %s383 = scalar_select %p382, %s381, 8
      %s384 = smul.u32 128, %s383
      %s385 = smul.u32 %s384, 3
      %p386 = scmp.lt.s32.totalorder %s23, 1
      %s387 = scalar_select %p386, %s23, 1
      %p388 = scmp.lt.s32.totalorder %s380, 19
      %s389 = scalar_select %p388, %s380, 19
      %s390 = smul.addr %s389, 3
      %s391 = smul.addr %s387, 60
      %s392 = sadd.s32 %s390, %s391
      %s393 = smul.addr %s392, 8
      %s394 = scalar_lea.vmem %s0, %s393
      %s395 = smul.u32 8, %s24
      %s396 = ssub.s32 20, %s395
      %p397 = scmp.lt.s32.totalorder %s396, 8
      %s398 = scalar_select %p397, %s396, 8
      %s399 = smul.u32 128, %s398
      %s400 = smul.u32 %s399, 3
      %s401 = sadd.s32 %s24, 1
      %s402 = smul.u32 %s401, 2
      %s403 = smul.u32 4, %s402
      %p404 = scmp.lt.s32.totalorder %s23, 1
      %s405 = scalar_select %p404, %s23, 1
      %p406 = scmp.lt.s32.totalorder %s403, 19
      %s407 = scalar_select %p406, %s403, 19
      %s408 = smul.addr %s407, 3
      %s409 = smul.addr %s405, 60
      %s410 = sadd.s32 %s408, %s409
      %s411 = smul.addr %s410, 8
      %s412 = scalar_lea.vmem %s1, %s411
      %s413 = sadd.s32 %s24, 1
      %s414 = smul.u32 %s413, 2
      %s415 = smul.u32 4, %s414
      %s416 = smul.u32 16, %s24
      %p417 = scmp.lt.s32.totalorder %s23, 1
      %s418 = scalar_select %p417, %s23, 1
      %p419 = scmp.lt.s32.totalorder %s416, 31
      %s420 = scalar_select %p419, %s416, 31
      %s421 = smul.addr %s418, 32
      %s422 = sadd.s32 %s420, %s421
      %s423 = smul.addr %s422, 8
      %s424 = scalar_lea.vmem %s8, %s423
      %s425 = smul.u32 16, %s24
      %v426 = vld [vmem:[%s394] sm:$0xff]
      %v427 = vld [vmem:[%s394 + $0x8] sm:$0xff]
      %v428 = vld [vmem:[%s394 + $0x10] sm:$0x3]
      %v429 = vld [vmem:[%s394 + $0x18] sm:$0xff]
      %v430 = vld [vmem:[%s394 + $0x20] sm:$0xff]
      %v431 = vld [vmem:[%s394 + $0x28] sm:$0x3]
      %v432 = vld [vmem:[%s394 + $0x30] sm:$0xff]
      %v433 = vld [vmem:[%s394 + $0x38] sm:$0xff]
      %v434 = vld [vmem:[%s394 + $0x40] sm:$0x3]
      %v435 = vld [vmem:[%s394 + $0x48] sm:$0xff]
      %v436 = vld [vmem:[%s394 + $0x50] sm:$0xff]
      %v437 = vld [vmem:[%s394 + $0x58] sm:$0x3]
      %v438 = vld [vmem:[%s394 + $0x60] sm:$0xff]
      %v439 = vld [vmem:[%s394 + $0x68] sm:$0xff]
      %v440 = vld [vmem:[%s394 + $0x70] sm:$0x3]
      %v441 = vld [vmem:[%s394 + $0x78] sm:$0xff]
      %v442 = vld [vmem:[%s394 + $0x80] sm:$0xff]
      %v443 = vld [vmem:[%s394 + $0x88] sm:$0x3]
      %v444 = vld [vmem:[%s394 + $0x90] sm:$0xff]
      %v445 = vld [vmem:[%s394 + $0x98] sm:$0xff]
      %v446 = vld [vmem:[%s394 + $0xa0] sm:$0x3]
      %v447 = vld [vmem:[%s394 + $0xa8] sm:$0xff]
      %v448 = vld [vmem:[%s394 + $0xb0] sm:$0xff]
      %v449 = vld [vmem:[%s394 + $0xb8] sm:$0x3]
      %v450 = vld [vmem:[%s412] sm:$0xff]
      %v451 = vld [vmem:[%s412 + $0x8] sm:$0xff]
      %v452 = vld [vmem:[%s412 + $0x10] sm:$0x3]
      %v453 = vld [vmem:[%s412 + $0x18] sm:$0xff]
      %v454 = vld [vmem:[%s412 + $0x20] sm:$0xff]
      %v455 = vld [vmem:[%s412 + $0x28] sm:$0x3]
      %v456 = vld [vmem:[%s412 + $0x30] sm:$0xff]
      %v457 = vld [vmem:[%s412 + $0x38] sm:$0xff]
      %v458 = vld [vmem:[%s412 + $0x40] sm:$0x3]
      %v459 = vld [vmem:[%s412 + $0x48] sm:$0xff]
      %v460 = vld [vmem:[%s412 + $0x50] sm:$0xff]
      %v461 = vld [vmem:[%s412 + $0x58] sm:$0x3]
      %v462 = vmax.f32 %v426, 0.0
      %v463 = vmax.f32 %v427, 0.0
      %v464 = vmax.f32 %v428, 0.0
      %v465 = vmax.f32 %v429, 0.0
      %v466 = vmax.f32 %v430, 0.0
      %v467 = vmax.f32 %v431, 0.0
      %v468 = vmax.f32 %v432, 0.0
      %v469 = vmax.f32 %v433, 0.0
      %v470 = vmax.f32 %v434, 0.0
      %v471 = vmax.f32 %v435, 0.0
      %v472 = vmax.f32 %v436, 0.0
      %v473 = vmax.f32 %v437, 0.0
      %v474 = vmax.f32 %v438, 0.0
      %v475 = vmax.f32 %v439, 0.0
      %v476 = vmax.f32 %v440, 0.0
      %v477 = vmax.f32 %v441, 0.0
      %v478 = vmax.f32 %v442, 0.0
      %v479 = vmax.f32 %v443, 0.0
      %v480 = vmax.f32 %v444, 0.0
      %v481 = vmax.f32 %v445, 0.0
      %v482 = vmax.f32 %v446, 0.0
      %v483 = vmax.f32 %v447, 0.0
      %v484 = vmax.f32 %v448, 0.0
      %v485 = vmax.f32 %v449, 0.0
      %v486 = vmax.f32 %v450, 0.0
      %v487 = vmax.f32 %v451, 0.0
      %v488 = vmax.f32 %v452, 0.0
      %v489 = vmax.f32 %v453, 0.0
      %v490 = vmax.f32 %v454, 0.0
      %v491 = vmax.f32 %v455, 0.0
      %v492 = vmax.f32 %v456, 0.0
      %v493 = vmax.f32 %v457, 0.0
      %v494 = vmax.f32 %v458, 0.0
      %v495 = vmax.f32 %v459, 0.0
      %v496 = vmax.f32 %v460, 0.0
      %v497 = vmax.f32 %v461, 0.0
      %vm534 = vcmask 1046528
      %v535 = vrot.slane %v462, 1
      %v536 = vrot.slane %v463, 1
      %v537 = vsel %vm534, %v535, %v536
      %v538 = vrot.slane %v464, 1
      %v539 = vsel %vm534, %v536, %v538
      %v540 = vrot.slane %v465, 1
      %v541 = vrot.slane %v466, 1
      %v542 = vsel %vm534, %v540, %v541
      %v543 = vrot.slane %v467, 1
      %v544 = vsel %vm534, %v541, %v543
      %v545 = vrot.slane %v468, 1
      %v546 = vrot.slane %v469, 1
      %v547 = vsel %vm534, %v545, %v546
      %v548 = vrot.slane %v470, 1
      %v549 = vsel %vm534, %v546, %v548
      %v550 = vrot.slane %v471, 1
      %v551 = vrot.slane %v472, 1
      %v552 = vsel %vm534, %v550, %v551
      %v553 = vrot.slane %v473, 1
      %v554 = vsel %vm534, %v551, %v553
      %v555 = vrot.slane %v474, 1
      %v556 = vrot.slane %v475, 1
      %v557 = vsel %vm534, %v555, %v556
      %v558 = vrot.slane %v476, 1
      %v559 = vsel %vm534, %v556, %v558
      %v560 = vrot.slane %v477, 1
      %v561 = vrot.slane %v478, 1
      %v562 = vsel %vm534, %v560, %v561
      %v563 = vrot.slane %v479, 1
      %v564 = vsel %vm534, %v561, %v563
      %v565 = vrot.slane %v480, 1
      %v566 = vrot.slane %v481, 1
      %v567 = vsel %vm534, %v565, %v566
      %v568 = vrot.slane %v482, 1
      %v569 = vsel %vm534, %v566, %v568
      %v570 = vrot.slane %v483, 1
      %v571 = vrot.slane %v484, 1
      %v572 = vsel %vm534, %v570, %v571
      %v573 = vrot.slane %v485, 1
      %v574 = vsel %vm534, %v571, %v573
      %v575 = vrot.slane %v486, 1
      %v576 = vrot.slane %v487, 1
      %v577 = vsel %vm534, %v575, %v576
      %v578 = vrot.slane %v488, 1
      %v579 = vsel %vm534, %v576, %v578
      %v580 = vrot.slane %v489, 1
      %v581 = vrot.slane %v490, 1
      %v582 = vsel %vm534, %v580, %v581
      %v583 = vrot.slane %v491, 1
      %v584 = vsel %vm534, %v581, %v583
      %v585 = vrot.slane %v492, 1
      %v586 = vrot.slane %v493, 1
      %v587 = vsel %vm534, %v585, %v586
      %v588 = vrot.slane %v494, 1
      %v589 = vsel %vm534, %v586, %v588
      %v590 = vrot.slane %v495, 1
      %v591 = vrot.slane %v496, 1
      %v592 = vsel %vm534, %v590, %v591
      %v593 = vrot.slane %v497, 1
      %v594 = vsel %vm534, %v591, %v593
      %595 = vrot.lane.b32.xlu0 %v537, 4
      %v596 = vpop.permute.xlu0 %595
      %597 = vrot.lane.b32.xlu0 %v539, 4
      %v598 = vpop.permute.xlu0 %597
      %599 = vrot.lane.b32.xlu0 %v542, 4
      %v600 = vpop.permute.xlu0 %599
      %601 = vrot.lane.b32.xlu0 %v544, 4
      %v602 = vpop.permute.xlu0 %601
      %603 = vrot.lane.b32.xlu0 %v547, 4
      %v604 = vpop.permute.xlu0 %603
      %605 = vrot.lane.b32.xlu0 %v549, 4
      %v606 = vpop.permute.xlu0 %605
      %607 = vrot.lane.b32.xlu0 %v552, 4
      %v608 = vpop.permute.xlu0 %607
      %609 = vrot.lane.b32.xlu0 %v554, 4
      %v610 = vpop.permute.xlu0 %609
      %611 = vrot.lane.b32.xlu0 %v557, 4
      %v612 = vpop.permute.xlu0 %611
      %613 = vrot.lane.b32.xlu0 %v559, 4
      %v614 = vpop.permute.xlu0 %613
      %615 = vrot.lane.b32.xlu0 %v562, 4
      %v616 = vpop.permute.xlu0 %615
      %617 = vrot.lane.b32.xlu0 %v564, 4
      %v618 = vpop.permute.xlu0 %617
      %619 = vrot.lane.b32.xlu0 %v567, 4
      %v620 = vpop.permute.xlu0 %619
      %621 = vrot.lane.b32.xlu0 %v569, 4
      %v622 = vpop.permute.xlu0 %621
      %623 = vrot.lane.b32.xlu0 %v572, 4
      %v624 = vpop.permute.xlu0 %623
      %625 = vrot.lane.b32.xlu0 %v574, 4
      %v626 = vpop.permute.xlu0 %625
      %627 = vrot.lane.b32.xlu0 %v577, 4
      %v628 = vpop.permute.xlu0 %627
      %629 = vrot.lane.b32.xlu0 %v579, 4
      %v630 = vpop.permute.xlu0 %629
      %631 = vrot.lane.b32.xlu0 %v582, 4
      %v632 = vpop.permute.xlu0 %631
      %633 = vrot.lane.b32.xlu0 %v584, 4
      %v634 = vpop.permute.xlu0 %633
      %635 = vrot.lane.b32.xlu0 %v587, 4
      %v636 = vpop.permute.xlu0 %635
      %637 = vrot.lane.b32.xlu0 %v589, 4
      %v638 = vpop.permute.xlu0 %637
      %639 = vrot.lane.b32.xlu0 %v592, 4
      %v640 = vpop.permute.xlu0 %639
      %641 = vrot.lane.b32.xlu0 %v594, 4
      %v642 = vpop.permute.xlu0 %641
      %vm667 = vcmask 1045504
      %v668 = vrot.slane %v462, 2
      %v669 = vrot.slane %v463, 2
      %v670 = vsel %vm667, %v668, %v669
      %v671 = vrot.slane %v464, 2
      %v672 = vsel %vm667, %v669, %v671
      %v673 = vrot.slane %v465, 2
      %v674 = vrot.slane %v466, 2
      %v675 = vsel %vm667, %v673, %v674
      %v676 = vrot.slane %v467, 2
      %v677 = vsel %vm667, %v674, %v676
      %v678 = vrot.slane %v468, 2
      %v679 = vrot.slane %v469, 2
      %v680 = vsel %vm667, %v678, %v679
      %v681 = vrot.slane %v470, 2
      %v682 = vsel %vm667, %v679, %v681
      %v683 = vrot.slane %v471, 2
      %v684 = vrot.slane %v472, 2
      %v685 = vsel %vm667, %v683, %v684
      %v686 = vrot.slane %v473, 2
      %v687 = vsel %vm667, %v684, %v686
      %v688 = vrot.slane %v474, 2
      %v689 = vrot.slane %v475, 2
      %v690 = vsel %vm667, %v688, %v689
      %v691 = vrot.slane %v476, 2
      %v692 = vsel %vm667, %v689, %v691
      %v693 = vrot.slane %v477, 2
      %v694 = vrot.slane %v478, 2
      %v695 = vsel %vm667, %v693, %v694
      %v696 = vrot.slane %v479, 2
      %v697 = vsel %vm667, %v694, %v696
      %v698 = vrot.slane %v480, 2
      %v699 = vrot.slane %v481, 2
      %v700 = vsel %vm667, %v698, %v699
      %v701 = vrot.slane %v482, 2
      %v702 = vsel %vm667, %v699, %v701
      %v703 = vrot.slane %v483, 2
      %v704 = vrot.slane %v484, 2
      %v705 = vsel %vm667, %v703, %v704
      %v706 = vrot.slane %v485, 2
      %v707 = vsel %vm667, %v704, %v706
      %v708 = vrot.slane %v486, 2
      %v709 = vrot.slane %v487, 2
      %v710 = vsel %vm667, %v708, %v709
      %v711 = vrot.slane %v488, 2
      %v712 = vsel %vm667, %v709, %v711
      %v713 = vrot.slane %v489, 2
      %v714 = vrot.slane %v490, 2
      %v715 = vsel %vm667, %v713, %v714
      %v716 = vrot.slane %v491, 2
      %v717 = vsel %vm667, %v714, %v716
      %v718 = vrot.slane %v492, 2
      %v719 = vrot.slane %v493, 2
      %v720 = vsel %vm667, %v718, %v719
      %v721 = vrot.slane %v494, 2
      %v722 = vsel %vm667, %v719, %v721
      %v723 = vrot.slane %v495, 2
      %v724 = vrot.slane %v496, 2
      %v725 = vsel %vm667, %v723, %v724
      %v726 = vrot.slane %v497, 2
      %v727 = vsel %vm667, %v724, %v726
      %728 = vrot.lane.b32.xlu0 %v670, 8
      %v729 = vpop.permute.xlu0 %728
      %730 = vrot.lane.b32.xlu0 %v672, 8
      %v731 = vpop.permute.xlu0 %730
      %732 = vrot.lane.b32.xlu0 %v675, 8
      %v733 = vpop.permute.xlu0 %732
      %734 = vrot.lane.b32.xlu0 %v677, 8
      %v735 = vpop.permute.xlu0 %734
      %736 = vrot.lane.b32.xlu0 %v680, 8
      %v737 = vpop.permute.xlu0 %736
      %738 = vrot.lane.b32.xlu0 %v682, 8
      %v739 = vpop.permute.xlu0 %738
      %740 = vrot.lane.b32.xlu0 %v685, 8
      %v741 = vpop.permute.xlu0 %740
      %742 = vrot.lane.b32.xlu0 %v687, 8
      %v743 = vpop.permute.xlu0 %742
      %744 = vrot.lane.b32.xlu0 %v690, 8
      %v745 = vpop.permute.xlu0 %744
      %746 = vrot.lane.b32.xlu0 %v692, 8
      %v747 = vpop.permute.xlu0 %746
      %748 = vrot.lane.b32.xlu0 %v695, 8
      %v749 = vpop.permute.xlu0 %748
      %750 = vrot.lane.b32.xlu0 %v697, 8
      %v751 = vpop.permute.xlu0 %750
      %752 = vrot.lane.b32.xlu0 %v700, 8
      %v753 = vpop.permute.xlu0 %752
      %754 = vrot.lane.b32.xlu0 %v702, 8
      %v755 = vpop.permute.xlu0 %754
      %756 = vrot.lane.b32.xlu0 %v705, 8
      %v757 = vpop.permute.xlu0 %756
      %758 = vrot.lane.b32.xlu0 %v707, 8
      %v759 = vpop.permute.xlu0 %758
      %760 = vrot.lane.b32.xlu0 %v710, 8
      %v761 = vpop.permute.xlu0 %760
      %762 = vrot.lane.b32.xlu0 %v712, 8
      %v763 = vpop.permute.xlu0 %762
      %764 = vrot.lane.b32.xlu0 %v715, 8
      %v765 = vpop.permute.xlu0 %764
      %766 = vrot.lane.b32.xlu0 %v717, 8
      %v767 = vpop.permute.xlu0 %766
      %768 = vrot.lane.b32.xlu0 %v720, 8
      %v769 = vpop.permute.xlu0 %768
      %770 = vrot.lane.b32.xlu0 %v722, 8
      %v771 = vpop.permute.xlu0 %770
      %772 = vrot.lane.b32.xlu0 %v725, 8
      %v773 = vpop.permute.xlu0 %772
      %774 = vrot.lane.b32.xlu0 %v727, 8
      %v775 = vpop.permute.xlu0 %774
      %vm800 = vcmask 31744
      %v801 = vsel %vm800, %v462, %v596
      %v802 = vsel %vm800, %v463, %v598
      %v803 = vsel %vm800, %v465, %v600
      %v804 = vsel %vm800, %v466, %v602
      %v805 = vsel %vm800, %v468, %v604
      %v806 = vsel %vm800, %v469, %v606
      %v807 = vsel %vm800, %v471, %v608
      %v808 = vsel %vm800, %v472, %v610
      %v809 = vsel %vm800, %v474, %v612
      %v810 = vsel %vm800, %v475, %v614
      %v811 = vsel %vm800, %v477, %v616
      %v812 = vsel %vm800, %v478, %v618
      %v813 = vsel %vm800, %v480, %v620
      %v814 = vsel %vm800, %v481, %v622
      %v815 = vsel %vm800, %v483, %v624
      %v816 = vsel %vm800, %v484, %v626
      %v817 = vsel %vm800, %v486, %v628
      %v818 = vsel %vm800, %v487, %v630
      %v819 = vsel %vm800, %v489, %v632
      %v820 = vsel %vm800, %v490, %v634
      %v821 = vsel %vm800, %v492, %v636
      %v822 = vsel %vm800, %v493, %v638
      %v823 = vsel %vm800, %v495, %v640
      %v824 = vsel %vm800, %v496, %v642
      %vm825 = vcmask 64512
      %v826 = vsel %vm825, %v801, %v729
      %v827 = vsel %vm825, %v802, %v731
      %v828 = vsel %vm825, %v803, %v733
      %v829 = vsel %vm825, %v804, %v735
      %v830 = vsel %vm825, %v805, %v737
      %v831 = vsel %vm825, %v806, %v739
      %v832 = vsel %vm825, %v807, %v741
      %v833 = vsel %vm825, %v808, %v743
      %v834 = vsel %vm825, %v809, %v745
      %v835 = vsel %vm825, %v810, %v747
      %v836 = vsel %vm825, %v811, %v749
      %v837 = vsel %vm825, %v812, %v751
      %v838 = vsel %vm825, %v813, %v753
      %v839 = vsel %vm825, %v814, %v755
      %v840 = vsel %vm825, %v815, %v757
      %v841 = vsel %vm825, %v816, %v759
      %v842 = vsel %vm825, %v817, %v761
      %v843 = vsel %vm825, %v818, %v763
      %v844 = vsel %vm825, %v819, %v765
      %v845 = vsel %vm825, %v820, %v767
      %v846 = vsel %vm825, %v821, %v769
      %v847 = vsel %vm825, %v822, %v771
      %v848 = vsel %vm825, %v823, %v773
      %v849 = vsel %vm825, %v824, %v775
      %v850 = vld [vmem:[%s2] sm:$0xff]
      %v851 = vld [vmem:[%s2 + $0x8] sm:$0xf]
      %s852 = scalar_lea.vmem %s2, 16
      %v853 = vld [vmem:[%s852] sm:$0xff]
      %v854 = vld [vmem:[%s852 + $0x8] sm:$0xf]
      %vm855 = vcmask 97280
      %v857 = vsel %vm855, %v828, 0
      %v860 = vsel %vm855, %v829, 0
      %v863 = vsel %vm855, %v830, 0
      %v866 = vsel %vm855, %v831, 0
      %v869 = vsel %vm855, %v832, 0
      %v872 = vsel %vm855, %v833, 0
      %v875 = vsel %vm855, %v834, 0
      %v878 = vsel %vm855, %v835, 0
      %v881 = vsel %vm855, %v836, 0
      %v884 = vsel %vm855, %v837, 0
      %v887 = vsel %vm855, %v838, 0
      %v890 = vsel %vm855, %v839, 0
      %v893 = vsel %vm855, %v840, 0
      %v896 = vsel %vm855, %v841, 0
      %v899 = vsel %vm855, %v842, 0
      %v902 = vsel %vm855, %v843, 0
      %v905 = vsel %vm855, %v844, 0
      %v908 = vsel %vm855, %v845, 0
      %v911 = vsel %vm855, %v846, 0
      %v914 = vsel %vm855, %v847, 0
      %vm916 = vcmask 1043456
      %v918 = vsel %vm916, %v854, 0
      %920 = vmatprep.subr.mxu0 0.0
      %921 = vmatpush1.msra.mxu0 %v853
      %922 = vmatprep.subr.mxu0 0.0
      %923 = vmatpush1.msra.mxu0 %v918
      %924 = vmatprep.subr.mxu0 0.0
      %925 = vmatpush1.msra.mxu0 0.0
      %926 = vmatprep.subr.mxu0 0.0
      %927 = vmatpush1.msra.mxu0 0.0
      %928 = vmatprep.subr.mxu0 0.0
      %929 = vmatpush1.msra.mxu0 0.0
      %930 = vmatprep.subr.mxu0 0.0
      %931 = vmatpush1.msra.mxu0 0.0
      %932 = vmatprep.subr.mxu0 0.0
      %933 = vmatpush1.msra.mxu0 0.0
      %934 = vmatprep.subr.mxu0 0.0
      %935 = vmatpush1.msra.mxu0 0.0
      %936 = vmatprep.subr.mxu0 0.0
      %937 = vmatpush1.msra.mxu0 0.0
      %938 = vmatprep.subr.mxu0 0.0
      %939 = vmatpush1.msra.mxu0 0.0
      %940 = vmatprep.subr.mxu0 0.0
      %941 = vmatpush1.msra.mxu0 0.0
      %942 = vmatprep.subr.mxu0 0.0
      %943 = vmatpush1.msra.mxu0 0.0
      %944 = vmatprep.subr.mxu0 0.0
      %945 = vmatpush1.msra.mxu0 0.0
      %946 = vmatprep.subr.mxu0 0.0
      %947 = vmatpush1.msra.mxu0 0.0
      %948 = vmatprep.subr.mxu0 0.0
      %949 = vmatpush1.msra.mxu0 0.0
      %950 = vmatprep.subr.mxu0 0.0
      %951 = vmatpush1.msra.mxu0 0.0
      %952 = vmatprep.subr.mxu0 0.0
      %953 = vmatpush1.msra.mxu0 0.0
      %954 = vmatprep.subr.mxu0 0.0
      %955 = vmatpush1.msra.mxu0 0.0
      %956 = vmatprep.subr.mxu0 0.0
      %957 = vmatpush1.msra.mxu0 0.0
      %958 = vmatprep.subr.mxu0 0.0
      %959 = vmatpush1.msra.mxu0 0.0
      %960 = vmatprep.subr.mxu0 0.0
      %961 = vmatpush1.msra.mxu0 0.0
      %962 = vmatprep.subr.mxu0 0.0
      %963 = vmatpush1.msra.mxu0 0.0
      %964 = vmatprep.subr.mxu0 0.0
      %965 = vmatpush1.msra.mxu0 0.0
      %966 = vmatprep.subr.mxu0 0.0
      %967 = vmatpush1.msra.mxu0 0.0
      %968 = vmatprep.subr.mxu0 0.0
      %969 = vmatpush1.msra.mxu0 0.0
      %970 = vmatprep.subr.mxu0 0.0
      %971 = vmatpush1.msra.mxu0 0.0
      %972 = vmatprep.subr.mxu0 0.0
      %973 = vmatpush1.msra.mxu0 0.0
      %974 = vmatprep.subr.mxu0 0.0
      %975 = vmatpush1.msra.mxu0 0.0
      %976 = vmatprep.subr.mxu0 0.0
      %977 = vmatpush1.msra.mxu0 0.0
      %978 = vmatprep.subr.mxu0 0.0
      %979 = vmatpush1.msra.mxu0 0.0
      %980 = vmatprep.subr.mxu0 0.0
      %981 = vmatpush1.msra.mxu0 0.0
      %982 = vmatprep.subr.mxu0 0.0
      %983 = vmatpush1.msra.mxu0 0.0
      %984 = vmatprep.mubr.f32.mxu0 0.0
      %985 = vmatmul.mubr.f32.gmra.mrb[0].mxu0 %v857
      %v986 = vpop.f32.mrb[0].mxu0
      %v987 = vadd.f32 0.0, %v986
      %v988 = vpop.f32.mrb[0].mxu0
      %989 = vmatprep.mubr.f32.mxu0 0.0
      %990 = vmatmul.mubr.f32.gmra.mrb[0].mxu0 %v860
      %v991 = vpop.f32.mrb[0].mxu0
      %v992 = vadd.f32 0.0, %v991
      %v993 = vpop.f32.mrb[0].mxu0
      %994 = vmatprep.mubr.f32.mxu0 0.0
      %995 = vmatmul.mubr.f32.gmra.mrb[0].mxu0 %v863
      %v996 = vpop.f32.mrb[0].mxu0
      %v997 = vadd.f32 0.0, %v996
      %v998 = vpop.f32.mrb[0].mxu0
      %999 = vmatprep.mubr.f32.mxu0 0.0
      %1000 = vmatmul.mubr.f32.gmra.mrb[0].mxu0 %v866
      %v1001 = vpop.f32.mrb[0].mxu0
      %v1002 = vadd.f32 0.0, %v1001
      %v1003 = vpop.f32.mrb[0].mxu0
      %1004 = vmatprep.mubr.f32.mxu0 0.0
      %1005 = vmatmul.mubr.f32.gmra.mrb[0].mxu0 %v869
      %v1006 = vpop.f32.mrb[0].mxu0
      %v1007 = vadd.f32 0.0, %v1006
      %v1008 = vpop.f32.mrb[0].mxu0
      %1009 = vmatprep.mubr.f32.mxu0 0.0
      %1010 = vmatmul.mubr.f32.gmra.mrb[0].mxu0 %v872
      %v1011 = vpop.f32.mrb[0].mxu0
      %v1012 = vadd.f32 0.0, %v1011
      %v1013 = vpop.f32.mrb[0].mxu0
      %1014 = vmatprep.mubr.f32.mxu0 0.0
      %1015 = vmatmul.mubr.f32.gmra.mrb[0].mxu0 %v875
      %v1016 = vpop.f32.mrb[0].mxu0
      %v1017 = vadd.f32 0.0, %v1016
      %v1018 = vpop.f32.mrb[0].mxu0
      %1019 = vmatprep.mubr.f32.mxu0 0.0
      %1020 = vmatmul.mubr.f32.gmra.mrb[0].mxu0 %v878
      %v1021 = vpop.f32.mrb[0].mxu0
      %v1022 = vadd.f32 0.0, %v1021
      %v1023 = vpop.f32.mrb[0].mxu0
      %1024 = vmatprep.mubr.f32.mxu0 0.0
      %1025 = vmatmul.mubr.f32.gmra.mrb[0].mxu0 %v881
      %v1026 = vpop.f32.mrb[0].mxu0
      %v1027 = vadd.f32 0.0, %v1026
      %v1028 = vpop.f32.mrb[0].mxu0
      %1029 = vmatprep.mubr.f32.mxu0 0.0
      %1030 = vmatmul.mubr.f32.gmra.mrb[0].mxu0 %v884
      %v1031 = vpop.f32.mrb[0].mxu0
      %v1032 = vadd.f32 0.0, %v1031
      %v1033 = vpop.f32.mrb[0].mxu0
      %1034 = vmatprep.mubr.f32.mxu0 0.0
      %1035 = vmatmul.mubr.f32.gmra.mrb[0].mxu0 %v887
      %v1036 = vpop.f32.mrb[0].mxu0
      %v1037 = vadd.f32 0.0, %v1036
      %v1038 = vpop.f32.mrb[0].mxu0
      %1039 = vmatprep.mubr.f32.mxu0 0.0
      %1040 = vmatmul.mubr.f32.gmra.mrb[0].mxu0 %v890
      %v1041 = vpop.f32.mrb[0].mxu0
      %v1042 = vadd.f32 0.0, %v1041
      %v1043 = vpop.f32.mrb[0].mxu0
      %1044 = vmatprep.mubr.f32.mxu0 0.0
      %1045 = vmatmul.mubr.f32.gmra.mrb[0].mxu0 %v893
      %v1046 = vpop.f32.mrb[0].mxu0
      %v1047 = vadd.f32 0.0, %v1046
      %v1048 = vpop.f32.mrb[0].mxu0
      %1049 = vmatprep.mubr.f32.mxu0 0.0
      %1050 = vmatmul.mubr.f32.gmra.mrb[0].mxu0 %v896
      %v1051 = vpop.f32.mrb[0].mxu0
      %v1052 = vadd.f32 0.0, %v1051
      %v1053 = vpop.f32.mrb[0].mxu0
      %1054 = vmatprep.mubr.f32.mxu0 0.0
      %1055 = vmatmul.mubr.f32.gmra.mrb[0].mxu0 %v899
      %v1056 = vpop.f32.mrb[0].mxu0
      %v1057 = vadd.f32 0.0, %v1056
      %v1058 = vpop.f32.mrb[0].mxu0
      %1059 = vmatprep.mubr.f32.mxu0 0.0
      %1060 = vmatmul.mubr.f32.gmra.mrb[0].mxu0 %v902
      %v1061 = vpop.f32.mrb[0].mxu0
      %v1062 = vadd.f32 0.0, %v1061
      %v1063 = vpop.f32.mrb[0].mxu0
      %1064 = vmatprep.mubr.f32.mxu0 0.0
      %1065 = vmatmul.mubr.f32.gmra.mrb[0].mxu0 %v905
      %v1066 = vpop.f32.mrb[0].mxu0
      %v1067 = vadd.f32 0.0, %v1066
      %v1068 = vpop.f32.mrb[0].mxu0
      %1069 = vmatprep.mubr.f32.mxu0 0.0
      %1070 = vmatmul.mubr.f32.gmra.mrb[0].mxu0 %v908
      %v1071 = vpop.f32.mrb[0].mxu0
      %v1072 = vadd.f32 0.0, %v1071
      %v1073 = vpop.f32.mrb[0].mxu0
      %1074 = vmatprep.mubr.f32.mxu0 0.0
      %1075 = vmatmul.mubr.f32.gmra.mrb[0].mxu0 %v911
      %v1076 = vpop.f32.mrb[0].mxu0
      %v1077 = vadd.f32 0.0, %v1076
      %v1078 = vpop.f32.mrb[0].mxu0
      %1079 = vmatprep.mubr.f32.mxu0 0.0
      %1080 = vmatmul.mubr.f32.gmra.mrb[0].mxu0 %v914
      %v1081 = vpop.f32.mrb[0].mxu0
      %v1082 = vadd.f32 0.0, %v1081
      %v1083 = vpop.f32.mrb[0].mxu0
      %1084 = vdwg.mxu0
      %v1086 = vsel %vm855, %v826, 0
      %v1089 = vsel %vm855, %v827, 0
      %v1092 = vsel %vm916, %v851, 0
      %1094 = vmatprep.subr.mxu0 0.0
      %1095 = vmatpush1.msra.mxu0 %v850
      %1096 = vmatprep.subr.mxu0 0.0
      %1097 = vmatpush1.msra.mxu0 %v1092
      %1098 = vmatprep.subr.mxu0 0.0
      %1099 = vmatpush1.msra.mxu0 0.0
      %1100 = vmatprep.subr.mxu0 0.0
      %1101 = vmatpush1.msra.mxu0 0.0
      %1102 = vmatprep.subr.mxu0 0.0
      %1103 = vmatpush1.msra.mxu0 0.0
      %1104 = vmatprep.subr.mxu0 0.0
      %1105 = vmatpush1.msra.mxu0 0.0
      %1106 = vmatprep.subr.mxu0 0.0
      %1107 = vmatpush1.msra.mxu0 0.0
      %1108 = vmatprep.subr.mxu0 0.0
      %1109 = vmatpush1.msra.mxu0 0.0
      %1110 = vmatprep.subr.mxu0 0.0
      %1111 = vmatpush1.msra.mxu0 0.0
      %1112 = vmatprep.subr.mxu0 0.0
      %1113 = vmatpush1.msra.mxu0 0.0
      %1114 = vmatprep.subr.mxu0 0.0
      %1115 = vmatpush1.msra.mxu0 0.0
      %1116 = vmatprep.subr.mxu0 0.0
      %1117 = vmatpush1.msra.mxu0 0.0
      %1118 = vmatprep.subr.mxu0 0.0
      %1119 = vmatpush1.msra.mxu0 0.0
      %1120 = vmatprep.subr.mxu0 0.0
      %1121 = vmatpush1.msra.mxu0 0.0
      %1122 = vmatprep.subr.mxu0 0.0
      %1123 = vmatpush1.msra.mxu0 0.0
      %1124 = vmatprep.subr.mxu0 0.0
      %1125 = vmatpush1.msra.mxu0 0.0
      %1126 = vmatprep.subr.mxu0 0.0
      %1127 = vmatpush1.msra.mxu0 0.0
      %1128 = vmatprep.subr.mxu0 0.0
      %1129 = vmatpush1.msra.mxu0 0.0
      %1130 = vmatprep.subr.mxu0 0.0
      %1131 = vmatpush1.msra.mxu0 0.0
      %1132 = vmatprep.subr.mxu0 0.0
      %1133 = vmatpush1.msra.mxu0 0.0
      %1134 = vmatprep.subr.mxu0 0.0
      %1135 = vmatpush1.msra.mxu0 0.0
      %1136 = vmatprep.subr.mxu0 0.0
      %1137 = vmatpush1.msra.mxu0 0.0
      %1138 = vmatprep.subr.mxu0 0.0
      %1139 = vmatpush1.msra.mxu0 0.0
      %1140 = vmatprep.subr.mxu0 0.0
      %1141 = vmatpush1.msra.mxu0 0.0
      %1142 = vmatprep.subr.mxu0 0.0
      %1143 = vmatpush1.msra.mxu0 0.0
      %1144 = vmatprep.subr.mxu0 0.0
      %1145 = vmatpush1.msra.mxu0 0.0
      %1146 = vmatprep.subr.mxu0 0.0
      %1147 = vmatpush1.msra.mxu0 0.0
      %1148 = vmatprep.subr.mxu0 0.0
      %1149 = vmatpush1.msra.mxu0 0.0
      %1150 = vmatprep.subr.mxu0 0.0
      %1151 = vmatpush1.msra.mxu0 0.0
      %1152 = vmatprep.subr.mxu0 0.0
      %1153 = vmatpush1.msra.mxu0 0.0
      %1154 = vmatprep.subr.mxu0 0.0
      %1155 = vmatpush1.msra.mxu0 0.0
      %1156 = vmatprep.subr.mxu0 0.0
      %1157 = vmatpush1.msra.mxu0 0.0
      %1158 = vmatprep.mubr.f32.mxu0 0.0
      %1159 = vmatmul.mubr.f32.gmra.mrb[0].mxu0 %v1086
      %v1160 = vpop.f32.mrb[0].mxu0
      %v1161 = vadd.f32 %v987, %v1160
      %v1162 = vpop.f32.mrb[0].mxu0
      %1163 = vmatprep.mubr.f32.mxu0 0.0
      %1164 = vmatmul.mubr.f32.gmra.mrb[0].mxu0 %v1089
      %v1165 = vpop.f32.mrb[0].mxu0
      %v1166 = vadd.f32 %v992, %v1165
      %v1167 = vpop.f32.mrb[0].mxu0
      %1168 = vmatprep.mubr.f32.mxu0 0.0
      %1169 = vmatmul.mubr.f32.gmra.mrb[0].mxu0 %v857
      %v1170 = vpop.f32.mrb[0].mxu0
      %v1171 = vadd.f32 %v997, %v1170
      %v1172 = vpop.f32.mrb[0].mxu0
      %1173 = vmatprep.mubr.f32.mxu0 0.0
      %1174 = vmatmul.mubr.f32.gmra.mrb[0].mxu0 %v860
      %v1175 = vpop.f32.mrb[0].mxu0
      %v1176 = vadd.f32 %v1002, %v1175
      %v1177 = vpop.f32.mrb[0].mxu0
      %1178 = vmatprep.mubr.f32.mxu0 0.0
      %1179 = vmatmul.mubr.f32.gmra.mrb[0].mxu0 %v863
      %v1180 = vpop.f32.mrb[0].mxu0
      %v1181 = vadd.f32 %v1007, %v1180
      %v1182 = vpop.f32.mrb[0].mxu0
      %1183 = vmatprep.mubr.f32.mxu0 0.0
      %1184 = vmatmul.mubr.f32.gmra.mrb[0].mxu0 %v866
      %v1185 = vpop.f32.mrb[0].mxu0
      %v1186 = vadd.f32 %v1012, %v1185
      %v1187 = vpop.f32.mrb[0].mxu0
      %1188 = vmatprep.mubr.f32.mxu0 0.0
      %1189 = vmatmul.mubr.f32.gmra.mrb[0].mxu0 %v869
      %v1190 = vpop.f32.mrb[0].mxu0
      %v1191 = vadd.f32 %v1017, %v1190
      %v1192 = vpop.f32.mrb[0].mxu0
      %1193 = vmatprep.mubr.f32.mxu0 0.0
      %1194 = vmatmul.mubr.f32.gmra.mrb[0].mxu0 %v872
      %v1195 = vpop.f32.mrb[0].mxu0
      %v1196 = vadd.f32 %v1022, %v1195
      %v1197 = vpop.f32.mrb[0].mxu0
      %1198 = vmatprep.mubr.f32.mxu0 0.0
      %1199 = vmatmul.mubr.f32.gmra.mrb[0].mxu0 %v875
      %v1200 = vpop.f32.mrb[0].mxu0
      %v1201 = vadd.f32 %v1027, %v1200
      %v1202 = vpop.f32.mrb[0].mxu0
      %1203 = vmatprep.mubr.f32.mxu0 0.0
      %1204 = vmatmul.mubr.f32.gmra.mrb[0].mxu0 %v878
      %v1205 = vpop.f32.mrb[0].mxu0
      %v1206 = vadd.f32 %v1032, %v1205
      %v1207 = vpop.f32.mrb[0].mxu0
      %1208 = vmatprep.mubr.f32.mxu0 0.0
      %1209 = vmatmul.mubr.f32.gmra.mrb[0].mxu0 %v881
      %v1210 = vpop.f32.mrb[0].mxu0
      %v1211 = vadd.f32 %v1037, %v1210
      %v1212 = vpop.f32.mrb[0].mxu0
      %1213 = vmatprep.mubr.f32.mxu0 0.0
      %1214 = vmatmul.mubr.f32.gmra.mrb[0].mxu0 %v884
      %v1215 = vpop.f32.mrb[0].mxu0
      %v1216 = vadd.f32 %v1042, %v1215
      %v1217 = vpop.f32.mrb[0].mxu0
      %1218 = vmatprep.mubr.f32.mxu0 0.0
      %1219 = vmatmul.mubr.f32.gmra.mrb[0].mxu0 %v887
      %v1220 = vpop.f32.mrb[0].mxu0
      %v1221 = vadd.f32 %v1047, %v1220
      %v1222 = vpop.f32.mrb[0].mxu0
      %1223 = vmatprep.mubr.f32.mxu0 0.0
      %1224 = vmatmul.mubr.f32.gmra.mrb[0].mxu0 %v890
      %v1225 = vpop.f32.mrb[0].mxu0
      %v1226 = vadd.f32 %v1052, %v1225
      %v1227 = vpop.f32.mrb[0].mxu0
      %1228 = vmatprep.mubr.f32.mxu0 0.0
      %1229 = vmatmul.mubr.f32.gmra.mrb[0].mxu0 %v893
      %v1230 = vpop.f32.mrb[0].mxu0
      %v1231 = vadd.f32 %v1057, %v1230
      %v1232 = vpop.f32.mrb[0].mxu0
      %1233 = vmatprep.mubr.f32.mxu0 0.0
      %1234 = vmatmul.mubr.f32.gmra.mrb[0].mxu0 %v896
      %v1235 = vpop.f32.mrb[0].mxu0
      %v1236 = vadd.f32 %v1062, %v1235
      %v1237 = vpop.f32.mrb[0].mxu0
      %1238 = vmatprep.mubr.f32.mxu0 0.0
      %1239 = vmatmul.mubr.f32.gmra.mrb[0].mxu0 %v899
      %v1240 = vpop.f32.mrb[0].mxu0
      %v1241 = vadd.f32 %v1067, %v1240
      %v1242 = vpop.f32.mrb[0].mxu0
      %1243 = vmatprep.mubr.f32.mxu0 0.0
      %1244 = vmatmul.mubr.f32.gmra.mrb[0].mxu0 %v902
      %v1245 = vpop.f32.mrb[0].mxu0
      %v1246 = vadd.f32 %v1072, %v1245
      %v1247 = vpop.f32.mrb[0].mxu0
      %1248 = vmatprep.mubr.f32.mxu0 0.0
      %1249 = vmatmul.mubr.f32.gmra.mrb[0].mxu0 %v905
      %v1250 = vpop.f32.mrb[0].mxu0
      %v1251 = vadd.f32 %v1077, %v1250
      %v1252 = vpop.f32.mrb[0].mxu0
      %1253 = vmatprep.mubr.f32.mxu0 0.0
      %1254 = vmatmul.mubr.f32.gmra.mrb[0].mxu0 %v908
      %v1255 = vpop.f32.mrb[0].mxu0
      %v1256 = vadd.f32 %v1082, %v1255
      %v1257 = vpop.f32.mrb[0].mxu0
      %1258 = vdwg.mxu0
      %s1259 = scalar_lea.vmem %s2, 32
      %v1260 = vld [vmem:[%s1259] sm:$0xff]
      %v1261 = vld [vmem:[%s1259 + $0x8] sm:$0xf]
      %v1263 = vsel %vm855, %v848, 0
      %v1266 = vsel %vm855, %v849, 0
      %v1269 = vsel %vm916, %v1261, 0
      %1271 = vmatprep.subr.mxu0 0.0
      %1272 = vmatpush1.msra.mxu0 %v1260
      %1273 = vmatprep.subr.mxu0 0.0
      %1274 = vmatpush1.msra.mxu0 %v1269
      %1275 = vmatprep.subr.mxu0 0.0
      %1276 = vmatpush1.msra.mxu0 0.0
      %1277 = vmatprep.subr.mxu0 0.0
      %1278 = vmatpush1.msra.mxu0 0.0
      %1279 = vmatprep.subr.mxu0 0.0
      %1280 = vmatpush1.msra.mxu0 0.0
      %1281 = vmatprep.subr.mxu0 0.0
      %1282 = vmatpush1.msra.mxu0 0.0
      %1283 = vmatprep.subr.mxu0 0.0
      %1284 = vmatpush1.msra.mxu0 0.0
      %1285 = vmatprep.subr.mxu0 0.0
      %1286 = vmatpush1.msra.mxu0 0.0
      %1287 = vmatprep.subr.mxu0 0.0
      %1288 = vmatpush1.msra.mxu0 0.0
      %1289 = vmatprep.subr.mxu0 0.0
      %1290 = vmatpush1.msra.mxu0 0.0
      %1291 = vmatprep.subr.mxu0 0.0
      %1292 = vmatpush1.msra.mxu0 0.0
      %1293 = vmatprep.subr.mxu0 0.0
      %1294 = vmatpush1.msra.mxu0 0.0
      %1295 = vmatprep.subr.mxu0 0.0
      %1296 = vmatpush1.msra.mxu0 0.0
      %1297 = vmatprep.subr.mxu0 0.0
      %1298 = vmatpush1.msra.mxu0 0.0
      %1299 = vmatprep.subr.mxu0 0.0
      %1300 = vmatpush1.msra.mxu0 0.0
      %1301 = vmatprep.subr.mxu0 0.0
      %1302 = vmatpush1.msra.mxu0 0.0
      %1303 = vmatprep.subr.mxu0 0.0
      %1304 = vmatpush1.msra.mxu0 0.0
      %1305 = vmatprep.subr.mxu0 0.0
      %1306 = vmatpush1.msra.mxu0 0.0
      %1307 = vmatprep.subr.mxu0 0.0
      %1308 = vmatpush1.msra.mxu0 0.0
      %1309 = vmatprep.subr.mxu0 0.0
      %1310 = vmatpush1.msra.mxu0 0.0
      %1311 = vmatprep.subr.mxu0 0.0
      %1312 = vmatpush1.msra.mxu0 0.0
      %1313 = vmatprep.subr.mxu0 0.0
      %1314 = vmatpush1.msra.mxu0 0.0
      %1315 = vmatprep.subr.mxu0 0.0
      %1316 = vmatpush1.msra.mxu0 0.0
      %1317 = vmatprep.subr.mxu0 0.0
      %1318 = vmatpush1.msra.mxu0 0.0
      %1319 = vmatprep.subr.mxu0 0.0
      %1320 = vmatpush1.msra.mxu0 0.0
      %1321 = vmatprep.subr.mxu0 0.0
      %1322 = vmatpush1.msra.mxu0 0.0
      %1323 = vmatprep.subr.mxu0 0.0
      %1324 = vmatpush1.msra.mxu0 0.0
      %1325 = vmatprep.subr.mxu0 0.0
      %1326 = vmatpush1.msra.mxu0 0.0
      %1327 = vmatprep.subr.mxu0 0.0
      %1328 = vmatpush1.msra.mxu0 0.0
      %1329 = vmatprep.subr.mxu0 0.0
      %1330 = vmatpush1.msra.mxu0 0.0
      %1331 = vmatprep.subr.mxu0 0.0
      %1332 = vmatpush1.msra.mxu0 0.0
      %1333 = vmatprep.subr.mxu0 0.0
      %1334 = vmatpush1.msra.mxu0 0.0
      %1335 = vmatprep.mubr.f32.mxu0 0.0
      %1336 = vmatmul.mubr.f32.gmra.mrb[0].mxu0 %v863
      %v1337 = vpop.f32.mrb[0].mxu0
      %v1338 = vadd.f32 0.0, %v1337
      %v1339 = vpop.f32.mrb[0].mxu0
      %1340 = vmatprep.mubr.f32.mxu0 0.0
      %1341 = vmatmul.mubr.f32.gmra.mrb[0].mxu0 %v866
      %v1342 = vpop.f32.mrb[0].mxu0
      %v1343 = vadd.f32 0.0, %v1342
      %v1344 = vpop.f32.mrb[0].mxu0
      %1345 = vmatprep.mubr.f32.mxu0 0.0
      %1346 = vmatmul.mubr.f32.gmra.mrb[0].mxu0 %v869
      %v1347 = vpop.f32.mrb[0].mxu0
      %v1348 = vadd.f32 0.0, %v1347
      %v1349 = vpop.f32.mrb[0].mxu0
      %1350 = vmatprep.mubr.f32.mxu0 0.0
      %1351 = vmatmul.mubr.f32.gmra.mrb[0].mxu0 %v872
      %v1352 = vpop.f32.mrb[0].mxu0
      %v1353 = vadd.f32 0.0, %v1352
      %v1354 = vpop.f32.mrb[0].mxu0
      %1355 = vmatprep.mubr.f32.mxu0 0.0
      %1356 = vmatmul.mubr.f32.gmra.mrb[0].mxu0 %v875
      %v1357 = vpop.f32.mrb[0].mxu0
      %v1358 = vadd.f32 0.0, %v1357
      %v1359 = vpop.f32.mrb[0].mxu0
      %1360 = vmatprep.mubr.f32.mxu0 0.0
      %1361 = vmatmul.mubr.f32.gmra.mrb[0].mxu0 %v878
      %v1362 = vpop.f32.mrb[0].mxu0
      %v1363 = vadd.f32 0.0, %v1362
      %v1364 = vpop.f32.mrb[0].mxu0
      %1365 = vmatprep.mubr.f32.mxu0 0.0
      %1366 = vmatmul.mubr.f32.gmra.mrb[0].mxu0 %v881
      %v1367 = vpop.f32.mrb[0].mxu0
      %v1368 = vadd.f32 0.0, %v1367
      %v1369 = vpop.f32.mrb[0].mxu0
      %1370 = vmatprep.mubr.f32.mxu0 0.0
      %1371 = vmatmul.mubr.f32.gmra.mrb[0].mxu0 %v884
      %v1372 = vpop.f32.mrb[0].mxu0
      %v1373 = vadd.f32 0.0, %v1372
      %v1374 = vpop.f32.mrb[0].mxu0
      %1375 = vmatprep.mubr.f32.mxu0 0.0
      %1376 = vmatmul.mubr.f32.gmra.mrb[0].mxu0 %v887
      %v1377 = vpop.f32.mrb[0].mxu0
      %v1378 = vadd.f32 0.0, %v1377
      %v1379 = vpop.f32.mrb[0].mxu0
      %1380 = vmatprep.mubr.f32.mxu0 0.0
      %1381 = vmatmul.mubr.f32.gmra.mrb[0].mxu0 %v890
      %v1382 = vpop.f32.mrb[0].mxu0
      %v1383 = vadd.f32 0.0, %v1382
      %v1384 = vpop.f32.mrb[0].mxu0
      %1385 = vmatprep.mubr.f32.mxu0 0.0
      %1386 = vmatmul.mubr.f32.gmra.mrb[0].mxu0 %v893
      %v1387 = vpop.f32.mrb[0].mxu0
      %v1388 = vadd.f32 0.0, %v1387
      %v1389 = vpop.f32.mrb[0].mxu0
      %1390 = vmatprep.mubr.f32.mxu0 0.0
      %1391 = vmatmul.mubr.f32.gmra.mrb[0].mxu0 %v896
      %v1392 = vpop.f32.mrb[0].mxu0
      %v1393 = vadd.f32 0.0, %v1392
      %v1394 = vpop.f32.mrb[0].mxu0
      %1395 = vmatprep.mubr.f32.mxu0 0.0
      %1396 = vmatmul.mubr.f32.gmra.mrb[0].mxu0 %v899
      %v1397 = vpop.f32.mrb[0].mxu0
      %v1398 = vadd.f32 0.0, %v1397
      %v1399 = vpop.f32.mrb[0].mxu0
      %1400 = vmatprep.mubr.f32.mxu0 0.0
      %1401 = vmatmul.mubr.f32.gmra.mrb[0].mxu0 %v902
      %v1402 = vpop.f32.mrb[0].mxu0
      %v1403 = vadd.f32 0.0, %v1402
      %v1404 = vpop.f32.mrb[0].mxu0
      %1405 = vmatprep.mubr.f32.mxu0 0.0
      %1406 = vmatmul.mubr.f32.gmra.mrb[0].mxu0 %v905
      %v1407 = vpop.f32.mrb[0].mxu0
      %v1408 = vadd.f32 0.0, %v1407
      %v1409 = vpop.f32.mrb[0].mxu0
      %1410 = vmatprep.mubr.f32.mxu0 0.0
      %1411 = vmatmul.mubr.f32.gmra.mrb[0].mxu0 %v908
      %v1412 = vpop.f32.mrb[0].mxu0
      %v1413 = vadd.f32 0.0, %v1412
      %v1414 = vpop.f32.mrb[0].mxu0
      %1415 = vmatprep.mubr.f32.mxu0 0.0
      %1416 = vmatmul.mubr.f32.gmra.mrb[0].mxu0 %v911
      %v1417 = vpop.f32.mrb[0].mxu0
      %v1418 = vadd.f32 0.0, %v1417
      %v1419 = vpop.f32.mrb[0].mxu0
      %1420 = vmatprep.mubr.f32.mxu0 0.0
      %1421 = vmatmul.mubr.f32.gmra.mrb[0].mxu0 %v914
      %v1422 = vpop.f32.mrb[0].mxu0
      %v1423 = vadd.f32 0.0, %v1422
      %v1424 = vpop.f32.mrb[0].mxu0
      %1425 = vmatprep.mubr.f32.mxu0 0.0
      %1426 = vmatmul.mubr.f32.gmra.mrb[0].mxu0 %v1263
      %v1427 = vpop.f32.mrb[0].mxu0
      %v1428 = vadd.f32 0.0, %v1427
      %v1429 = vpop.f32.mrb[0].mxu0
      %1430 = vmatprep.mubr.f32.mxu0 0.0
      %1431 = vmatmul.mubr.f32.gmra.mrb[0].mxu0 %v1266
      %v1432 = vpop.f32.mrb[0].mxu0
      %v1433 = vadd.f32 0.0, %v1432
      %v1434 = vpop.f32.mrb[0].mxu0
      %1435 = vdwg.mxu0
      %v1436 = vadd.f32 %v1161, %v1338
      %v1437 = vadd.f32 %v1166, %v1343
      %v1438 = vadd.f32 %v1171, %v1348
      %v1439 = vadd.f32 %v1176, %v1353
      %v1440 = vadd.f32 %v1181, %v1358
      %v1441 = vadd.f32 %v1186, %v1363
      %v1442 = vadd.f32 %v1191, %v1368
      %v1443 = vadd.f32 %v1196, %v1373
      %v1444 = vadd.f32 %v1201, %v1378
      %v1445 = vadd.f32 %v1206, %v1383
      %v1446 = vadd.f32 %v1211, %v1388
      %v1447 = vadd.f32 %v1216, %v1393
      %v1448 = vadd.f32 %v1221, %v1398
      %v1449 = vadd.f32 %v1226, %v1403
      %v1450 = vadd.f32 %v1231, %v1408
      %v1451 = vadd.f32 %v1236, %v1413
      %v1452 = vadd.f32 %v1241, %v1418
      %v1453 = vadd.f32 %v1246, %v1423
      %v1454 = vadd.f32 %v1251, %v1428
      %v1455 = vadd.f32 %v1256, %v1433
      %v1456 = vld [vmem:[%s3] sm:$0x1]
      %v1458 = vlaneseq
      %v1459 = vshrl.u32 %v1458, 7
      %v1460 = vsub.s32 0, %v1459
      %v1461 = vrot.slane %v1456, %v1460
      %v1463 = vadd.f32 %v1436, %v1461
      %v1464 = vadd.f32 %v1437, %v1461
      %v1465 = vadd.f32 %v1438, %v1461
      %v1466 = vadd.f32 %v1439, %v1461
      %v1467 = vadd.f32 %v1440, %v1461
      %v1468 = vadd.f32 %v1441, %v1461
      %v1469 = vadd.f32 %v1442, %v1461
      %v1470 = vadd.f32 %v1443, %v1461
      %v1471 = vadd.f32 %v1444, %v1461
      %v1472 = vadd.f32 %v1445, %v1461
      %v1473 = vadd.f32 %v1446, %v1461
      %v1474 = vadd.f32 %v1447, %v1461
      %v1475 = vadd.f32 %v1448, %v1461
      %v1476 = vadd.f32 %v1449, %v1461
      %v1477 = vadd.f32 %v1450, %v1461
      %v1478 = vadd.f32 %v1451, %v1461
      %v1479 = vadd.f32 %v1452, %v1461
      %v1480 = vadd.f32 %v1453, %v1461
      %v1481 = vadd.f32 %v1454, %v1461
      %v1482 = vadd.f32 %v1455, %v1461
      %v1483 = vmax.f32 %v1463, 0.0
      %v1484 = vmax.f32 %v1464, 0.0
      %v1485 = vmax.f32 %v1465, 0.0
      %v1486 = vmax.f32 %v1466, 0.0
      %v1487 = vmax.f32 %v1467, 0.0
      %v1488 = vmax.f32 %v1468, 0.0
      %v1489 = vmax.f32 %v1469, 0.0
      %v1490 = vmax.f32 %v1470, 0.0
      %v1491 = vmax.f32 %v1471, 0.0
      %v1492 = vmax.f32 %v1472, 0.0
      %v1493 = vmax.f32 %v1473, 0.0
      %v1494 = vmax.f32 %v1474, 0.0
      %v1495 = vmax.f32 %v1475, 0.0
      %v1496 = vmax.f32 %v1476, 0.0
      %v1497 = vmax.f32 %v1477, 0.0
      %v1498 = vmax.f32 %v1478, 0.0
      %v1499 = vmax.f32 %v1479, 0.0
      %v1500 = vmax.f32 %v1480, 0.0
      %v1501 = vmax.f32 %v1481, 0.0
      %v1502 = vmax.f32 %v1482, 0.0
      %1503 = vst.msk [vmem:[#allocation2 + $0x1] sm:$0xff] %vm825, %v1483
      %1504 = vst.msk [vmem:[#allocation2 + $0x9] sm:$0xff] %vm825, %v1484
      %1505 = vst.msk [vmem:[#allocation2 + $0x19] sm:$0xff] %vm825, %v1485
      %1506 = vst.msk [vmem:[#allocation2 + $0x21] sm:$0xff] %vm825, %v1486
      %1507 = vst.msk [vmem:[#allocation2 + $0x31] sm:$0xff] %vm825, %v1487
      %1508 = vst.msk [vmem:[#allocation2 + $0x39] sm:$0xff] %vm825, %v1488
      %1509 = vst.msk [vmem:[#allocation2 + $0x49] sm:$0xff] %vm825, %v1489
      %1510 = vst.msk [vmem:[#allocation2 + $0x51] sm:$0xff] %vm825, %v1490
      %1511 = vst.msk [vmem:[#allocation2 + $0x61] sm:$0xff] %vm825, %v1491
      %1512 = vst.msk [vmem:[#allocation2 + $0x69] sm:$0xff] %vm825, %v1492
      %1513 = vst.msk [vmem:[#allocation2 + $0x79] sm:$0xff] %vm825, %v1493
      %1514 = vst.msk [vmem:[#allocation2 + $0x81] sm:$0xff] %vm825, %v1494
      %1515 = vst.msk [vmem:[#allocation2 + $0x91] sm:$0xff] %vm825, %v1495
      %1516 = vst.msk [vmem:[#allocation2 + $0x99] sm:$0xff] %vm825, %v1496
      %1517 = vst.msk [vmem:[#allocation2 + $0xa9] sm:$0xff] %vm825, %v1497
      %1518 = vst.msk [vmem:[#allocation2 + $0xb1] sm:$0xff] %vm825, %v1498
      %1519 = vst.msk [vmem:[#allocation2 + $0xc1] sm:$0xff] %vm825, %v1499
      %1520 = vst.msk [vmem:[#allocation2 + $0xc9] sm:$0xff] %vm825, %v1500
      %1521 = vst.msk [vmem:[#allocation2 + $0xd9] sm:$0xff] %vm825, %v1501
      %1522 = vst.msk [vmem:[#allocation2 + $0xe1] sm:$0xff] %vm825, %v1502
      %vm1523 = vcmask 57344
      %1524 = vst.msk [vmem:[#allocation2] sm:$0x1] %vm1523, 0.0
      %1525 = vst.msk [vmem:[#allocation2 + $0x18] sm:$0x1] %vm1523, 0.0
      %1526 = vst.msk [vmem:[#allocation2 + $0x30] sm:$0x1] %vm1523, 0.0
      %1527 = vst.msk [vmem:[#allocation2 + $0x48] sm:$0x1] %vm1523, 0.0
      %1528 = vst.msk [vmem:[#allocation2 + $0x60] sm:$0x1] %vm1523, 0.0
      %1529 = vst.msk [vmem:[#allocation2 + $0x78] sm:$0x1] %vm1523, 0.0
      %1530 = vst.msk [vmem:[#allocation2 + $0x90] sm:$0x1] %vm1523, 0.0
      %1531 = vst.msk [vmem:[#allocation2 + $0xa8] sm:$0x1] %vm1523, 0.0
      %1532 = vst.msk [vmem:[#allocation2 + $0xc0] sm:$0x1] %vm1523, 0.0
      %1533 = vst.msk [vmem:[#allocation2 + $0xd8] sm:$0x1] %vm1523, 0.0
      %1534 = vst.msk [vmem:[#allocation2 + $0x11] sm:$0x1] %vm1523, 0.0
      %1535 = vst.msk [vmem:[#allocation2 + $0x29] sm:$0x1] %vm1523, 0.0
      %1536 = vst.msk [vmem:[#allocation2 + $0x41] sm:$0x1] %vm1523, 0.0
      %1537 = vst.msk [vmem:[#allocation2 + $0x59] sm:$0x1] %vm1523, 0.0
      %1538 = vst.msk [vmem:[#allocation2 + $0x71] sm:$0x1] %vm1523, 0.0
      %1539 = vst.msk [vmem:[#allocation2 + $0x89] sm:$0x1] %vm1523, 0.0
      %1540 = vst.msk [vmem:[#allocation2 + $0xa1] sm:$0x1] %vm1523, 0.0
      %1541 = vst.msk [vmem:[#allocation2 + $0xb9] sm:$0x1] %vm1523, 0.0
      %1542 = vst.msk [vmem:[#allocation2 + $0xd1] sm:$0x1] %vm1523, 0.0
      %1543 = vst.msk [vmem:[#allocation2 + $0xe9] sm:$0x1] %vm1523, 0.0
      %p1544 = scmp.eq.s32.totalorder %s24, 0
      // Predicated region
      $region53: #{tpu_custom_call.1} parent=51 // pred_check
        %p1545 = pneg %p1544
      $region54: #{tpu_custom_call.1} parent=51 // pred_check_branch
        %1547 = sbr.rel (%p1545) target = $region56
      $region55: #{tpu_custom_call.1} parent=51 // pred_region
        %1548 = vst.msk [vmem:[#allocation2] sm:$0xff] %vm825, 0.0
        %1549 = vst.msk [vmem:[#allocation2 + $0x8] sm:$0xff] %vm825, 0.0
        %vm1550 = vcmask 58368
        %1551 = vst.msk [vmem:[#allocation2 + $0x10] sm:$0x3] %vm1550, 0.0
      $region56: #{tpu_custom_call.1} parent=51 // pred_fallthru
        _
      %p1552 = scmp.eq.s32.totalorder %s24, 1
      // Predicated region
      $region57: #{tpu_custom_call.1} parent=51 // pred_check
        %p1553 = pneg %p1552
      $region58: #{tpu_custom_call.1} parent=51 // pred_check_branch
        %1555 = sbr.rel (%p1553) target = $region60
      $region59: #{tpu_custom_call.1} parent=51 // pred_region
        %s1556 = scalar_lea.vmem [#allocation2], 216
        %1557 = vst.msk [vmem:[%s1556] sm:$0xff] %vm825, 0.0
        %1558 = vst.msk [vmem:[%s1556 + $0x8] sm:$0xff] %vm825, 0.0
        %vm1559 = vcmask 58368
        %1560 = vst.msk [vmem:[%s1556 + $0x10] sm:$0x3] %vm1559, 0.0
      $region60: #{tpu_custom_call.1} parent=51 // pred_fallthru
        _
      %v1585 = vrot.slane %v432, 1
      %v1586 = vrot.slane %v433, 1
      %v1587 = vsel %vm534, %v1585, %v1586
      %v1588 = vrot.slane %v434, 1
      %v1589 = vsel %vm534, %v1586, %v1588
      %v1590 = vrot.slane %v435, 1
      %v1591 = vrot.slane %v436, 1
      %v1592 = vsel %vm534, %v1590, %v1591
      %v1593 = vrot.slane %v437, 1
      %v1594 = vsel %vm534, %v1591, %v1593
      %v1595 = vrot.slane %v438, 1
      %v1596 = vrot.slane %v439, 1
      %v1597 = vsel %vm534, %v1595, %v1596
      %v1598 = vrot.slane %v440, 1
      %v1599 = vsel %vm534, %v1596, %v1598
      %v1600 = vrot.slane %v441, 1
      %v1601 = vrot.slane %v442, 1
      %v1602 = vsel %vm534, %v1600, %v1601
      %v1603 = vrot.slane %v443, 1
      %v1604 = vsel %vm534, %v1601, %v1603
      %v1605 = vrot.slane %v444, 1
      %v1606 = vrot.slane %v445, 1
      %v1607 = vsel %vm534, %v1605, %v1606
      %v1608 = vrot.slane %v446, 1
      %v1609 = vsel %vm534, %v1606, %v1608
      %v1610 = vrot.slane %v447, 1
      %v1611 = vrot.slane %v448, 1
      %v1612 = vsel %vm534, %v1610, %v1611
      %v1613 = vrot.slane %v449, 1
      %v1614 = vsel %vm534, %v1611, %v1613
      %v1615 = vrot.slane %v450, 1
      %v1616 = vrot.slane %v451, 1
      %v1617 = vsel %vm534, %v1615, %v1616
      %v1618 = vrot.slane %v452, 1
      %v1619 = vsel %vm534, %v1616, %v1618
      %v1620 = vrot.slane %v453, 1
      %v1621 = vrot.slane %v454, 1
      %v1622 = vsel %vm534, %v1620, %v1621
      %v1623 = vrot.slane %v455, 1
      %v1624 = vsel %vm534, %v1621, %v1623
      %v1625 = vld [vmem:[%s6] sm:$0xf]
      %v1626 = vld [vmem:[%s7] sm:$0x1]
      %v1628 = vlaneseq
      %v1629 = vshrl.u32 %v1628, 7
      %v1630 = vsub.s32 0, %v1629
      %v1631 = vrot.slane %v1626, %v1630
      %v1633 = vsel %vm800, %v1587, 0
      %v1635 = vsel %vm800, %v1589, 0
      %v1637 = vsel %vm800, %v1592, 0
      %v1639 = vsel %vm800, %v1594, 0
      %v1641 = vsel %vm800, %v1597, 0
      %v1643 = vsel %vm800, %v1599, 0
      %v1645 = vsel %vm800, %v1602, 0
      %v1647 = vsel %vm800, %v1604, 0
      %v1649 = vsel %vm800, %v1607, 0
      %v1651 = vsel %vm800, %v1609, 0
      %v1653 = vsel %vm800, %v1612, 0
      %v1655 = vsel %vm800, %v1614, 0
      %v1657 = vsel %vm800, %v1617, 0
      %v1659 = vsel %vm800, %v1619, 0
      %v1661 = vsel %vm800, %v1622, 0
      %v1663 = vsel %vm800, %v1624, 0
      %v1666 = vsel %vm916, %v1625, 0
      %1668 = vmatprep.subr.mxu0 0.0
      %1669 = vmatpush1.msra.mxu0 %v1666
      %1670 = vmatprep.subr.mxu0 0.0
      %1671 = vmatpush1.msra.mxu0 0.0
      %1672 = vmatprep.subr.mxu0 0.0
      %1673 = vmatpush1.msra.mxu0 0.0
      %1674 = vmatprep.subr.mxu0 0.0
      %1675 = vmatpush1.msra.mxu0 0.0
      %1676 = vmatprep.subr.mxu0 0.0
      %1677 = vmatpush1.msra.mxu0 0.0
      %1678 = vmatprep.subr.mxu0 0.0
      %1679 = vmatpush1.msra.mxu0 0.0
      %1680 = vmatprep.subr.mxu0 0.0
      %1681 = vmatpush1.msra.mxu0 0.0
      %1682 = vmatprep.subr.mxu0 0.0
      %1683 = vmatpush1.msra.mxu0 0.0
      %1684 = vmatprep.subr.mxu0 0.0
      %1685 = vmatpush1.msra.mxu0 0.0
      %1686 = vmatprep.subr.mxu0 0.0
      %1687 = vmatpush1.msra.mxu0 0.0
      %1688 = vmatprep.subr.mxu0 0.0
      %1689 = vmatpush1.msra.mxu0 0.0
      %1690 = vmatprep.subr.mxu0 0.0
      %1691 = vmatpush1.msra.mxu0 0.0
      %1692 = vmatprep.subr.mxu0 0.0
      %1693 = vmatpush1.msra.mxu0 0.0
      %1694 = vmatprep.subr.mxu0 0.0
      %1695 = vmatpush1.msra.mxu0 0.0
      %1696 = vmatprep.subr.mxu0 0.0
      %1697 = vmatpush1.msra.mxu0 0.0
      %1698 = vmatprep.subr.mxu0 0.0
      %1699 = vmatpush1.msra.mxu0 0.0
      %1700 = vmatprep.subr.mxu0 0.0
      %1701 = vmatpush1.msra.mxu0 0.0
      %1702 = vmatprep.subr.mxu0 0.0
      %1703 = vmatpush1.msra.mxu0 0.0
      %1704 = vmatprep.subr.mxu0 0.0
      %1705 = vmatpush1.msra.mxu0 0.0
      %1706 = vmatprep.subr.mxu0 0.0
      %1707 = vmatpush1.msra.mxu0 0.0
      %1708 = vmatprep.subr.mxu0 0.0
      %1709 = vmatpush1.msra.mxu0 0.0
      %1710 = vmatprep.subr.mxu0 0.0
      %1711 = vmatpush1.msra.mxu0 0.0
      %1712 = vmatprep.subr.mxu0 0.0
      %1713 = vmatpush1.msra.mxu0 0.0
      %1714 = vmatprep.subr.mxu0 0.0
      %1715 = vmatpush1.msra.mxu0 0.0
      %1716 = vmatprep.subr.mxu0 0.0
      %1717 = vmatpush1.msra.mxu0 0.0
      %1718 = vmatprep.subr.mxu0 0.0
      %1719 = vmatpush1.msra.mxu0 0.0
      %1720 = vmatprep.subr.mxu0 0.0
      %1721 = vmatpush1.msra.mxu0 0.0
      %1722 = vmatprep.subr.mxu0 0.0
      %1723 = vmatpush1.msra.mxu0 0.0
      %1724 = vmatprep.subr.mxu0 0.0
      %1725 = vmatpush1.msra.mxu0 0.0
      %1726 = vmatprep.subr.mxu0 0.0
      %1727 = vmatpush1.msra.mxu0 0.0
      %1728 = vmatprep.subr.mxu0 0.0
      %1729 = vmatpush1.msra.mxu0 0.0
      %1730 = vmatprep.subr.mxu0 0.0
      %1731 = vmatpush1.msra.mxu0 0.0
      %1732 = vmatprep.mubr.f32.mxu0 0.0
      %1733 = vmatmul.mubr.f32.gmra.mrb[0].mxu0 %v1633
      %v1734 = vpop.f32.mrb[0].mxu0
      %v1735 = vadd.f32 %v1631, %v1734
      %v1736 = vpop.f32.mrb[0].mxu0
      %1737 = vmatprep.mubr.f32.mxu0 0.0
      %1738 = vmatmul.mubr.f32.gmra.mrb[0].mxu0 %v1635
      %v1739 = vpop.f32.mrb[0].mxu0
      %v1740 = vadd.f32 %v1631, %v1739
      %v1741 = vpop.f32.mrb[0].mxu0
      %1742 = vmatprep.mubr.f32.mxu0 0.0
      %1743 = vmatmul.mubr.f32.gmra.mrb[0].mxu0 %v1637
      %v1744 = vpop.f32.mrb[0].mxu0
      %v1745 = vadd.f32 %v1631, %v1744
      %v1746 = vpop.f32.mrb[0].mxu0
      %1747 = vmatprep.mubr.f32.mxu0 0.0
      %1748 = vmatmul.mubr.f32.gmra.mrb[0].mxu0 %v1639
      %v1749 = vpop.f32.mrb[0].mxu0
      %v1750 = vadd.f32 %v1631, %v1749
      %v1751 = vpop.f32.mrb[0].mxu0
      %1752 = vmatprep.mubr.f32.mxu0 0.0
      %1753 = vmatmul.mubr.f32.gmra.mrb[0].mxu0 %v1641
      %v1754 = vpop.f32.mrb[0].mxu0
      %v1755 = vadd.f32 %v1631, %v1754
      %v1756 = vpop.f32.mrb[0].mxu0
      %1757 = vmatprep.mubr.f32.mxu0 0.0
      %1758 = vmatmul.mubr.f32.gmra.mrb[0].mxu0 %v1643
      %v1759 = vpop.f32.mrb[0].mxu0
      %v1760 = vadd.f32 %v1631, %v1759
      %v1761 = vpop.f32.mrb[0].mxu0
      %1762 = vmatprep.mubr.f32.mxu0 0.0
      %1763 = vmatmul.mubr.f32.gmra.mrb[0].mxu0 %v1645
      %v1764 = vpop.f32.mrb[0].mxu0
      %v1765 = vadd.f32 %v1631, %v1764
      %v1766 = vpop.f32.mrb[0].mxu0
      %1767 = vmatprep.mubr.f32.mxu0 0.0
      %1768 = vmatmul.mubr.f32.gmra.mrb[0].mxu0 %v1647
      %v1769 = vpop.f32.mrb[0].mxu0
      %v1770 = vadd.f32 %v1631, %v1769
      %v1771 = vpop.f32.mrb[0].mxu0
      %1772 = vmatprep.mubr.f32.mxu0 0.0
      %1773 = vmatmul.mubr.f32.gmra.mrb[0].mxu0 %v1649
      %v1774 = vpop.f32.mrb[0].mxu0
      %v1775 = vadd.f32 %v1631, %v1774
      %v1776 = vpop.f32.mrb[0].mxu0
      %1777 = vmatprep.mubr.f32.mxu0 0.0
      %1778 = vmatmul.mubr.f32.gmra.mrb[0].mxu0 %v1651
      %v1779 = vpop.f32.mrb[0].mxu0
      %v1780 = vadd.f32 %v1631, %v1779
      %v1781 = vpop.f32.mrb[0].mxu0
      %1782 = vmatprep.mubr.f32.mxu0 0.0
      %1783 = vmatmul.mubr.f32.gmra.mrb[0].mxu0 %v1653
      %v1784 = vpop.f32.mrb[0].mxu0
      %v1785 = vadd.f32 %v1631, %v1784
      %v1786 = vpop.f32.mrb[0].mxu0
      %1787 = vmatprep.mubr.f32.mxu0 0.0
      %1788 = vmatmul.mubr.f32.gmra.mrb[0].mxu0 %v1655
      %v1789 = vpop.f32.mrb[0].mxu0
      %v1790 = vadd.f32 %v1631, %v1789
      %v1791 = vpop.f32.mrb[0].mxu0
      %1792 = vmatprep.mubr.f32.mxu0 0.0
      %1793 = vmatmul.mubr.f32.gmra.mrb[0].mxu0 %v1657
      %v1794 = vpop.f32.mrb[0].mxu0
      %v1795 = vadd.f32 %v1631, %v1794
      %v1796 = vpop.f32.mrb[0].mxu0
      %1797 = vmatprep.mubr.f32.mxu0 0.0
      %1798 = vmatmul.mubr.f32.gmra.mrb[0].mxu0 %v1659
      %v1799 = vpop.f32.mrb[0].mxu0
      %v1800 = vadd.f32 %v1631, %v1799
      %v1801 = vpop.f32.mrb[0].mxu0
      %1802 = vmatprep.mubr.f32.mxu0 0.0
      %1803 = vmatmul.mubr.f32.gmra.mrb[0].mxu0 %v1661
      %v1804 = vpop.f32.mrb[0].mxu0
      %v1805 = vadd.f32 %v1631, %v1804
      %v1806 = vpop.f32.mrb[0].mxu0
      %1807 = vmatprep.mubr.f32.mxu0 0.0
      %1808 = vmatmul.mubr.f32.gmra.mrb[0].mxu0 %v1663
      %v1809 = vpop.f32.mrb[0].mxu0
      %v1810 = vadd.f32 %v1631, %v1809
      %v1811 = vpop.f32.mrb[0].mxu0
      %1812 = vdwg.mxu0
      %v1813 = vld [vmem:[#allocation2] sm:$0xff]
      %v1814 = vld [vmem:[#allocation2 + $0x8] sm:$0xff]
      %v1815 = vld [vmem:[#allocation2 + $0x10] sm:$0x3]
      %v1816 = vld [vmem:[#allocation2 + $0x18] sm:$0xff]
      %v1817 = vld [vmem:[#allocation2 + $0x20] sm:$0xff]
      %v1818 = vld [vmem:[#allocation2 + $0x28] sm:$0x3]
      %v1819 = vld [vmem:[#allocation2 + $0x30] sm:$0xff]
      %v1820 = vld [vmem:[#allocation2 + $0x38] sm:$0xff]
      %v1821 = vld [vmem:[#allocation2 + $0x40] sm:$0x3]
      %v1822 = vld [vmem:[#allocation2 + $0x48] sm:$0xff]
      %v1823 = vld [vmem:[#allocation2 + $0x50] sm:$0xff]
      %v1824 = vld [vmem:[#allocation2 + $0x58] sm:$0x3]
      %v1825 = vld [vmem:[#allocation2 + $0x60] sm:$0xff]
      %v1826 = vld [vmem:[#allocation2 + $0x68] sm:$0xff]
      %v1827 = vld [vmem:[#allocation2 + $0x70] sm:$0x3]
      %v1828 = vld [vmem:[#allocation2 + $0x78] sm:$0xff]
      %v1829 = vld [vmem:[#allocation2 + $0x80] sm:$0xff]
      %v1830 = vld [vmem:[#allocation2 + $0x88] sm:$0x3]
      %v1831 = vld [vmem:[#allocation2 + $0x90] sm:$0xff]
      %v1832 = vld [vmem:[#allocation2 + $0x98] sm:$0xff]
      %v1833 = vld [vmem:[#allocation2 + $0xa0] sm:$0x3]
      %v1834 = vld [vmem:[#allocation2 + $0xa8] sm:$0xff]
      %v1835 = vld [vmem:[#allocation2 + $0xb0] sm:$0xff]
      %v1836 = vld [vmem:[#allocation2 + $0xb8] sm:$0x3]
      %v1837 = vld [vmem:[#allocation2 + $0xc0] sm:$0xff]
      %v1838 = vld [vmem:[#allocation2 + $0xc8] sm:$0xff]
      %v1839 = vld [vmem:[#allocation2 + $0xd0] sm:$0x3]
      %v1840 = vld [vmem:[#allocation2 + $0xd8] sm:$0xff]
      %v1841 = vld [vmem:[#allocation2 + $0xe0] sm:$0xff]
      %v1842 = vld [vmem:[#allocation2 + $0xe8] sm:$0x3]
      %v1873 = vrot.slane %v1813, 1
      %v1874 = vrot.slane %v1814, 1
      %v1875 = vsel %vm534, %v1873, %v1874
      %v1876 = vrot.slane %v1815, 1
      %v1877 = vsel %vm534, %v1874, %v1876
      %v1878 = vrot.slane %v1816, 1
      %v1879 = vrot.slane %v1817, 1
      %v1880 = vsel %vm534, %v1878, %v1879
      %v1881 = vrot.slane %v1818, 1
      %v1882 = vsel %vm534, %v1879, %v1881
      %v1883 = vrot.slane %v1819, 1
      %v1884 = vrot.slane %v1820, 1
      %v1885 = vsel %vm534, %v1883, %v1884
      %v1886 = vrot.slane %v1821, 1
      %v1887 = vsel %vm534, %v1884, %v1886
      %v1888 = vrot.slane %v1822, 1
      %v1889 = vrot.slane %v1823, 1
      %v1890 = vsel %vm534, %v1888, %v1889
      %v1891 = vrot.slane %v1824, 1
      %v1892 = vsel %vm534, %v1889, %v1891
      %v1893 = vrot.slane %v1825, 1
      %v1894 = vrot.slane %v1826, 1
      %v1895 = vsel %vm534, %v1893, %v1894
      %v1896 = vrot.slane %v1827, 1
      %v1897 = vsel %vm534, %v1894, %v1896
      %v1898 = vrot.slane %v1828, 1
      %v1899 = vrot.slane %v1829, 1
      %v1900 = vsel %vm534, %v1898, %v1899
      %v1901 = vrot.slane %v1830, 1
      %v1902 = vsel %vm534, %v1899, %v1901
      %v1903 = vrot.slane %v1831, 1
      %v1904 = vrot.slane %v1832, 1
      %v1905 = vsel %vm534, %v1903, %v1904
      %v1906 = vrot.slane %v1833, 1
      %v1907 = vsel %vm534, %v1904, %v1906
      %v1908 = vrot.slane %v1834, 1
      %v1909 = vrot.slane %v1835, 1
      %v1910 = vsel %vm534, %v1908, %v1909
      %v1911 = vrot.slane %v1836, 1
      %v1912 = vsel %vm534, %v1909, %v1911
      %v1913 = vrot.slane %v1837, 1
      %v1914 = vrot.slane %v1838, 1
      %v1915 = vsel %vm534, %v1913, %v1914
      %v1916 = vrot.slane %v1839, 1
      %v1917 = vsel %vm534, %v1914, %v1916
      %v1918 = vrot.slane %v1840, 1
      %v1919 = vrot.slane %v1841, 1
      %v1920 = vsel %vm534, %v1918, %v1919
      %v1921 = vrot.slane %v1842, 1
      %v1922 = vsel %vm534, %v1919, %v1921
      %1923 = vrot.lane.b32.xlu0 %v1875, 8
      %v1924 = vpop.permute.xlu0 %1923
      %1925 = vrot.lane.b32.xlu0 %v1877, 8
      %v1926 = vpop.permute.xlu0 %1925
      %1927 = vrot.lane.b32.xlu0 %v1880, 8
      %v1928 = vpop.permute.xlu0 %1927
      %1929 = vrot.lane.b32.xlu0 %v1882, 8
      %v1930 = vpop.permute.xlu0 %1929
      %1931 = vrot.lane.b32.xlu0 %v1885, 8
      %v1932 = vpop.permute.xlu0 %1931
      %1933 = vrot.lane.b32.xlu0 %v1887, 8
      %v1934 = vpop.permute.xlu0 %1933
      %1935 = vrot.lane.b32.xlu0 %v1890, 8
      %v1936 = vpop.permute.xlu0 %1935
      %1937 = vrot.lane.b32.xlu0 %v1892, 8
      %v1938 = vpop.permute.xlu0 %1937
      %1939 = vrot.lane.b32.xlu0 %v1895, 8
      %v1940 = vpop.permute.xlu0 %1939
      %1941 = vrot.lane.b32.xlu0 %v1897, 8
      %v1942 = vpop.permute.xlu0 %1941
      %1943 = vrot.lane.b32.xlu0 %v1900, 8
      %v1944 = vpop.permute.xlu0 %1943
      %1945 = vrot.lane.b32.xlu0 %v1902, 8
      %v1946 = vpop.permute.xlu0 %1945
      %1947 = vrot.lane.b32.xlu0 %v1905, 8
      %v1948 = vpop.permute.xlu0 %1947
      %1949 = vrot.lane.b32.xlu0 %v1907, 8
      %v1950 = vpop.permute.xlu0 %1949
      %1951 = vrot.lane.b32.xlu0 %v1910, 8
      %v1952 = vpop.permute.xlu0 %1951
      %1953 = vrot.lane.b32.xlu0 %v1912, 8
      %v1954 = vpop.permute.xlu0 %1953
      %1955 = vrot.lane.b32.xlu0 %v1915, 8
      %v1956 = vpop.permute.xlu0 %1955
      %1957 = vrot.lane.b32.xlu0 %v1917, 8
      %v1958 = vpop.permute.xlu0 %1957
      %1959 = vrot.lane.b32.xlu0 %v1920, 8
      %v1960 = vpop.permute.xlu0 %1959
      %1961 = vrot.lane.b32.xlu0 %v1922, 8
      %v1962 = vpop.permute.xlu0 %1961
      %v1983 = vrot.slane %v1813, 2
      %v1984 = vrot.slane %v1814, 2
      %v1985 = vsel %vm667, %v1983, %v1984
      %v1986 = vrot.slane %v1815, 2
      %v1987 = vsel %vm667, %v1984, %v1986
      %v1988 = vrot.slane %v1816, 2
      %v1989 = vrot.slane %v1817, 2
      %v1990 = vsel %vm667, %v1988, %v1989
      %v1991 = vrot.slane %v1818, 2
      %v1992 = vsel %vm667, %v1989, %v1991
      %v1993 = vrot.slane %v1819, 2
      %v1994 = vrot.slane %v1820, 2
      %v1995 = vsel %vm667, %v1993, %v1994
      %v1996 = vrot.slane %v1821, 2
      %v1997 = vsel %vm667, %v1994, %v1996
      %v1998 = vrot.slane %v1822, 2
      %v1999 = vrot.slane %v1823, 2
      %v2000 = vsel %vm667, %v1998, %v1999
      %v2001 = vrot.slane %v1824, 2
      %v2002 = vsel %vm667, %v1999, %v2001
      %v2003 = vrot.slane %v1825, 2
      %v2004 = vrot.slane %v1826, 2
      %v2005 = vsel %vm667, %v2003, %v2004
      %v2006 = vrot.slane %v1827, 2
      %v2007 = vsel %vm667, %v2004, %v2006
      %v2008 = vrot.slane %v1828, 2
      %v2009 = vrot.slane %v1829, 2
      %v2010 = vsel %vm667, %v2008, %v2009
      %v2011 = vrot.slane %v1830, 2
      %v2012 = vsel %vm667, %v2009, %v2011
      %v2013 = vrot.slane %v1831, 2
      %v2014 = vrot.slane %v1832, 2
      %v2015 = vsel %vm667, %v2013, %v2014
      %v2016 = vrot.slane %v1833, 2
      %v2017 = vsel %vm667, %v2014, %v2016
      %v2018 = vrot.slane %v1834, 2
      %v2019 = vrot.slane %v1835, 2
      %v2020 = vsel %vm667, %v2018, %v2019
      %v2021 = vrot.slane %v1836, 2
      %v2022 = vsel %vm667, %v2019, %v2021
      %v2023 = vrot.slane %v1837, 2
      %v2024 = vrot.slane %v1838, 2
      %v2025 = vsel %vm667, %v2023, %v2024
      %v2026 = vrot.slane %v1839, 2
      %v2027 = vsel %vm667, %v2024, %v2026
      %v2028 = vrot.slane %v1840, 2
      %v2029 = vrot.slane %v1841, 2
      %v2030 = vsel %vm667, %v2028, %v2029
      %v2031 = vrot.slane %v1842, 2
      %v2032 = vsel %vm667, %v2029, %v2031
      %2033 = vrot.lane.b32.xlu0 %v1985, 16
      %v2034 = vpop.permute.xlu0 %2033
      %2035 = vrot.lane.b32.xlu0 %v1987, 16
      %v2036 = vpop.permute.xlu0 %2035
      %2037 = vrot.lane.b32.xlu0 %v1990, 16
      %v2038 = vpop.permute.xlu0 %2037
      %2039 = vrot.lane.b32.xlu0 %v1992, 16
      %v2040 = vpop.permute.xlu0 %2039
      %2041 = vrot.lane.b32.xlu0 %v1995, 16
      %v2042 = vpop.permute.xlu0 %2041
      %2043 = vrot.lane.b32.xlu0 %v1997, 16
      %v2044 = vpop.permute.xlu0 %2043
      %2045 = vrot.lane.b32.xlu0 %v2000, 16
      %v2046 = vpop.permute.xlu0 %2045
      %2047 = vrot.lane.b32.xlu0 %v2002, 16
      %v2048 = vpop.permute.xlu0 %2047
      %2049 = vrot.lane.b32.xlu0 %v2005, 16
      %v2050 = vpop.permute.xlu0 %2049
      %2051 = vrot.lane.b32.xlu0 %v2007, 16
      %v2052 = vpop.permute.xlu0 %2051
      %2053 = vrot.lane.b32.xlu0 %v2010, 16
      %v2054 = vpop.permute.xlu0 %2053
      %2055 = vrot.lane.b32.xlu0 %v2012, 16
      %v2056 = vpop.permute.xlu0 %2055
      %2057 = vrot.lane.b32.xlu0 %v2015, 16
      %v2058 = vpop.permute.xlu0 %2057
      %2059 = vrot.lane.b32.xlu0 %v2017, 16
      %v2060 = vpop.permute.xlu0 %2059
      %2061 = vrot.lane.b32.xlu0 %v2020, 16
      %v2062 = vpop.permute.xlu0 %2061
      %2063 = vrot.lane.b32.xlu0 %v2022, 16
      %v2064 = vpop.permute.xlu0 %2063
      %2065 = vrot.lane.b32.xlu0 %v2025, 16
      %v2066 = vpop.permute.xlu0 %2065
      %2067 = vrot.lane.b32.xlu0 %v2027, 16
      %v2068 = vpop.permute.xlu0 %2067
      %2069 = vrot.lane.b32.xlu0 %v2030, 16
      %v2070 = vpop.permute.xlu0 %2069
      %2071 = vrot.lane.b32.xlu0 %v2032, 16
      %v2072 = vpop.permute.xlu0 %2071
      %v2093 = vsel %vm825, %v1813, %v1924
      %v2094 = vsel %vm825, %v1814, %v1926
      %v2095 = vsel %vm825, %v1816, %v1928
      %v2096 = vsel %vm825, %v1817, %v1930
      %v2097 = vsel %vm825, %v1819, %v1932
      %v2098 = vsel %vm825, %v1820, %v1934
      %v2099 = vsel %vm825, %v1822, %v1936
      %v2100 = vsel %vm825, %v1823, %v1938
      %v2101 = vsel %vm825, %v1825, %v1940
      %v2102 = vsel %vm825, %v1826, %v1942
      %v2103 = vsel %vm825, %v1828, %v1944
      %v2104 = vsel %vm825, %v1829, %v1946
      %v2105 = vsel %vm825, %v1831, %v1948
      %v2106 = vsel %vm825, %v1832, %v1950
      %v2107 = vsel %vm825, %v1834, %v1952
      %v2108 = vsel %vm825, %v1835, %v1954
      %v2109 = vsel %vm825, %v1837, %v1956
      %v2110 = vsel %vm825, %v1838, %v1958
      %v2111 = vsel %vm825, %v1840, %v1960
      %v2112 = vsel %vm825, %v1841, %v1962
      %vm2113 = vcmask 130048
      %v2114 = vsel %vm2113, %v2093, %v2034
      %v2115 = vsel %vm2113, %v2094, %v2036
      %v2116 = vsel %vm2113, %v2095, %v2038
      %v2117 = vsel %vm2113, %v2096, %v2040
      %v2118 = vsel %vm2113, %v2097, %v2042
      %v2119 = vsel %vm2113, %v2098, %v2044
      %v2120 = vsel %vm2113, %v2099, %v2046
      %v2121 = vsel %vm2113, %v2100, %v2048
      %v2122 = vsel %vm2113, %v2101, %v2050
      %v2123 = vsel %vm2113, %v2102, %v2052
      %v2124 = vsel %vm2113, %v2103, %v2054
      %v2125 = vsel %vm2113, %v2104, %v2056
      %v2126 = vsel %vm2113, %v2105, %v2058
      %v2127 = vsel %vm2113, %v2106, %v2060
      %v2128 = vsel %vm2113, %v2107, %v2062
      %v2129 = vsel %vm2113, %v2108, %v2064
      %v2130 = vsel %vm2113, %v2109, %v2066
      %v2131 = vsel %vm2113, %v2110, %v2068
      %v2132 = vsel %vm2113, %v2111, %v2070
      %v2133 = vsel %vm2113, %v2112, %v2072
      %v2134 = vld [vmem:[%s4] sm:$0xff]
      %v2135 = vld [vmem:[%s4 + $0x8] sm:$0xff]
      %v2136 = vld [vmem:[%s4 + $0x10] sm:$0xff]
      %vm2137 = vcmask 195584
      %v2139 = vsel %vm2137, %v2114, 0
      %v2142 = vsel %vm2137, %v2115, 0
      %v2145 = vsel %vm2137, %v2116, 0
      %v2148 = vsel %vm2137, %v2117, 0
      %v2151 = vsel %vm2137, %v2118, 0
      %v2154 = vsel %vm2137, %v2119, 0
      %v2157 = vsel %vm2137, %v2120, 0
      %v2160 = vsel %vm2137, %v2121, 0
      %v2163 = vsel %vm2137, %v2122, 0
      %v2166 = vsel %vm2137, %v2123, 0
      %v2169 = vsel %vm2137, %v2124, 0
      %v2172 = vsel %vm2137, %v2125, 0
      %v2175 = vsel %vm2137, %v2126, 0
      %v2178 = vsel %vm2137, %v2127, 0
      %v2181 = vsel %vm2137, %v2128, 0
      %v2184 = vsel %vm2137, %v2129, 0
      %2186 = vmatprep.subr.mxu0 0.0
      %2187 = vmatpush1.msra.mxu0 %v2134
      %2188 = vmatprep.subr.mxu0 0.0
      %2189 = vmatpush1.msra.mxu0 %v2135
      %2190 = vmatprep.subr.mxu0 0.0
      %2191 = vmatpush1.msra.mxu0 %v2136
      %2192 = vmatprep.subr.mxu0 0.0
      %2193 = vmatpush1.msra.mxu0 0.0
      %2194 = vmatprep.subr.mxu0 0.0
      %2195 = vmatpush1.msra.mxu0 0.0
      %2196 = vmatprep.subr.mxu0 0.0
      %2197 = vmatpush1.msra.mxu0 0.0
      %2198 = vmatprep.subr.mxu0 0.0
      %2199 = vmatpush1.msra.mxu0 0.0
      %2200 = vmatprep.subr.mxu0 0.0
      %2201 = vmatpush1.msra.mxu0 0.0
      %2202 = vmatprep.subr.mxu0 0.0
      %2203 = vmatpush1.msra.mxu0 0.0
      %2204 = vmatprep.subr.mxu0 0.0
      %2205 = vmatpush1.msra.mxu0 0.0
      %2206 = vmatprep.subr.mxu0 0.0
      %2207 = vmatpush1.msra.mxu0 0.0
      %2208 = vmatprep.subr.mxu0 0.0
      %2209 = vmatpush1.msra.mxu0 0.0
      %2210 = vmatprep.subr.mxu0 0.0
      %2211 = vmatpush1.msra.mxu0 0.0
      %2212 = vmatprep.subr.mxu0 0.0
      %2213 = vmatpush1.msra.mxu0 0.0
      %2214 = vmatprep.subr.mxu0 0.0
      %2215 = vmatpush1.msra.mxu0 0.0
      %2216 = vmatprep.subr.mxu0 0.0
      %2217 = vmatpush1.msra.mxu0 0.0
      %2218 = vmatprep.subr.mxu0 0.0
      %2219 = vmatpush1.msra.mxu0 0.0
      %2220 = vmatprep.subr.mxu0 0.0
      %2221 = vmatpush1.msra.mxu0 0.0
      %2222 = vmatprep.subr.mxu0 0.0
      %2223 = vmatpush1.msra.mxu0 0.0
      %2224 = vmatprep.subr.mxu0 0.0
      %2225 = vmatpush1.msra.mxu0 0.0
      %2226 = vmatprep.subr.mxu0 0.0
      %2227 = vmatpush1.msra.mxu0 0.0
      %2228 = vmatprep.subr.mxu0 0.0
      %2229 = vmatpush1.msra.mxu0 0.0
      %2230 = vmatprep.subr.mxu0 0.0
      %2231 = vmatpush1.msra.mxu0 0.0
      %2232 = vmatprep.subr.mxu0 0.0
      %2233 = vmatpush1.msra.mxu0 0.0
      %2234 = vmatprep.subr.mxu0 0.0
      %2235 = vmatpush1.msra.mxu0 0.0
      %2236 = vmatprep.subr.mxu0 0.0
      %2237 = vmatpush1.msra.mxu0 0.0
      %2238 = vmatprep.subr.mxu0 0.0
      %2239 = vmatpush1.msra.mxu0 0.0
      %2240 = vmatprep.subr.mxu0 0.0
      %2241 = vmatpush1.msra.mxu0 0.0
      %2242 = vmatprep.subr.mxu0 0.0
      %2243 = vmatpush1.msra.mxu0 0.0
      %2244 = vmatprep.subr.mxu0 0.0
      %2245 = vmatpush1.msra.mxu0 0.0
      %2246 = vmatprep.subr.mxu0 0.0
      %2247 = vmatpush1.msra.mxu0 0.0
      %2248 = vmatprep.subr.mxu0 0.0
      %2249 = vmatpush1.msra.mxu0 0.0
      %2250 = vmatprep.mubr.f32.mxu0 0.0
      %2251 = vmatmul.mubr.f32.gmra.mrb[0].mxu0 %v2139
      %v2252 = vpop.f32.mrb[0].mxu0
      %v2253 = vadd.f32 0.0, %v2252
      %v2254 = vpop.f32.mrb[0].mxu0
      %2255 = vmatprep.mubr.f32.mxu0 0.0
      %2256 = vmatmul.mubr.f32.gmra.mrb[0].mxu0 %v2142
      %v2257 = vpop.f32.mrb[0].mxu0
      %v2258 = vadd.f32 0.0, %v2257
      %v2259 = vpop.f32.mrb[0].mxu0
      %2260 = vmatprep.mubr.f32.mxu0 0.0
      %2261 = vmatmul.mubr.f32.gmra.mrb[0].mxu0 %v2145
      %v2262 = vpop.f32.mrb[0].mxu0
      %v2263 = vadd.f32 0.0, %v2262
      %v2264 = vpop.f32.mrb[0].mxu0
      %2265 = vmatprep.mubr.f32.mxu0 0.0
      %2266 = vmatmul.mubr.f32.gmra.mrb[0].mxu0 %v2148
      %v2267 = vpop.f32.mrb[0].mxu0
      %v2268 = vadd.f32 0.0, %v2267
      %v2269 = vpop.f32.mrb[0].mxu0
      %2270 = vmatprep.mubr.f32.mxu0 0.0
      %2271 = vmatmul.mubr.f32.gmra.mrb[0].mxu0 %v2151
      %v2272 = vpop.f32.mrb[0].mxu0
      %v2273 = vadd.f32 0.0, %v2272
      %v2274 = vpop.f32.mrb[0].mxu0
      %2275 = vmatprep.mubr.f32.mxu0 0.0
      %2276 = vmatmul.mubr.f32.gmra.mrb[0].mxu0 %v2154
      %v2277 = vpop.f32.mrb[0].mxu0
      %v2278 = vadd.f32 0.0, %v2277
      %v2279 = vpop.f32.mrb[0].mxu0
      %2280 = vmatprep.mubr.f32.mxu0 0.0
      %2281 = vmatmul.mubr.f32.gmra.mrb[0].mxu0 %v2157
      %v2282 = vpop.f32.mrb[0].mxu0
      %v2283 = vadd.f32 0.0, %v2282
      %v2284 = vpop.f32.mrb[0].mxu0
      %2285 = vmatprep.mubr.f32.mxu0 0.0
      %2286 = vmatmul.mubr.f32.gmra.mrb[0].mxu0 %v2160
      %v2287 = vpop.f32.mrb[0].mxu0
      %v2288 = vadd.f32 0.0, %v2287
      %v2289 = vpop.f32.mrb[0].mxu0
      %2290 = vmatprep.mubr.f32.mxu0 0.0
      %2291 = vmatmul.mubr.f32.gmra.mrb[0].mxu0 %v2163
      %v2292 = vpop.f32.mrb[0].mxu0
      %v2293 = vadd.f32 0.0, %v2292
      %v2294 = vpop.f32.mrb[0].mxu0
      %2295 = vmatprep.mubr.f32.mxu0 0.0
      %2296 = vmatmul.mubr.f32.gmra.mrb[0].mxu0 %v2166
      %v2297 = vpop.f32.mrb[0].mxu0
      %v2298 = vadd.f32 0.0, %v2297
      %v2299 = vpop.f32.mrb[0].mxu0
      %2300 = vmatprep.mubr.f32.mxu0 0.0
      %2301 = vmatmul.mubr.f32.gmra.mrb[0].mxu0 %v2169
      %v2302 = vpop.f32.mrb[0].mxu0
      %v2303 = vadd.f32 0.0, %v2302
      %v2304 = vpop.f32.mrb[0].mxu0
      %2305 = vmatprep.mubr.f32.mxu0 0.0
      %2306 = vmatmul.mubr.f32.gmra.mrb[0].mxu0 %v2172
      %v2307 = vpop.f32.mrb[0].mxu0
      %v2308 = vadd.f32 0.0, %v2307
      %v2309 = vpop.f32.mrb[0].mxu0
      %2310 = vmatprep.mubr.f32.mxu0 0.0
      %2311 = vmatmul.mubr.f32.gmra.mrb[0].mxu0 %v2175
      %v2312 = vpop.f32.mrb[0].mxu0
      %v2313 = vadd.f32 0.0, %v2312
      %v2314 = vpop.f32.mrb[0].mxu0
      %2315 = vmatprep.mubr.f32.mxu0 0.0
      %2316 = vmatmul.mubr.f32.gmra.mrb[0].mxu0 %v2178
      %v2317 = vpop.f32.mrb[0].mxu0
      %v2318 = vadd.f32 0.0, %v2317
      %v2319 = vpop.f32.mrb[0].mxu0
      %2320 = vmatprep.mubr.f32.mxu0 0.0
      %2321 = vmatmul.mubr.f32.gmra.mrb[0].mxu0 %v2181
      %v2322 = vpop.f32.mrb[0].mxu0
      %v2323 = vadd.f32 0.0, %v2322
      %v2324 = vpop.f32.mrb[0].mxu0
      %2325 = vmatprep.mubr.f32.mxu0 0.0
      %2326 = vmatmul.mubr.f32.gmra.mrb[0].mxu0 %v2184
      %v2327 = vpop.f32.mrb[0].mxu0
      %v2328 = vadd.f32 0.0, %v2327
      %v2329 = vpop.f32.mrb[0].mxu0
      %2330 = vdwg.mxu0
      %v2331 = vadd.f32 %v1735, %v2253
      %v2332 = vadd.f32 %v1740, %v2258
      %v2333 = vadd.f32 %v1745, %v2263
      %v2334 = vadd.f32 %v1750, %v2268
      %v2335 = vadd.f32 %v1755, %v2273
      %v2336 = vadd.f32 %v1760, %v2278
      %v2337 = vadd.f32 %v1765, %v2283
      %v2338 = vadd.f32 %v1770, %v2288
      %v2339 = vadd.f32 %v1775, %v2293
      %v2340 = vadd.f32 %v1780, %v2298
      %v2341 = vadd.f32 %v1785, %v2303
      %v2342 = vadd.f32 %v1790, %v2308
      %v2343 = vadd.f32 %v1795, %v2313
      %v2344 = vadd.f32 %v1800, %v2318
      %v2345 = vadd.f32 %v1805, %v2323
      %v2346 = vadd.f32 %v1810, %v2328
      %s2347 = scalar_lea.vmem %s4, 24
      %v2348 = vld [vmem:[%s2347] sm:$0xff]
      %v2349 = vld [vmem:[%s2347 + $0x8] sm:$0xff]
      %v2350 = vld [vmem:[%s2347 + $0x10] sm:$0xff]
      %v2352 = vsel %vm2137, %v2130, 0
      %v2355 = vsel %vm2137, %v2131, 0
      %2357 = vmatprep.subr.mxu0 0.0
      %2358 = vmatpush1.msra.mxu0 %v2348
      %2359 = vmatprep.subr.mxu0 0.0
      %2360 = vmatpush1.msra.mxu0 %v2349
      %2361 = vmatprep.subr.mxu0 0.0
      %2362 = vmatpush1.msra.mxu0 %v2350
      %2363 = vmatprep.subr.mxu0 0.0
      %2364 = vmatpush1.msra.mxu0 0.0
      %2365 = vmatprep.subr.mxu0 0.0
      %2366 = vmatpush1.msra.mxu0 0.0
      %2367 = vmatprep.subr.mxu0 0.0
      %2368 = vmatpush1.msra.mxu0 0.0
      %2369 = vmatprep.subr.mxu0 0.0
      %2370 = vmatpush1.msra.mxu0 0.0
      %2371 = vmatprep.subr.mxu0 0.0
      %2372 = vmatpush1.msra.mxu0 0.0
      %2373 = vmatprep.subr.mxu0 0.0
      %2374 = vmatpush1.msra.mxu0 0.0
      %2375 = vmatprep.subr.mxu0 0.0
      %2376 = vmatpush1.msra.mxu0 0.0
      %2377 = vmatprep.subr.mxu0 0.0
      %2378 = vmatpush1.msra.mxu0 0.0
      %2379 = vmatprep.subr.mxu0 0.0
      %2380 = vmatpush1.msra.mxu0 0.0
      %2381 = vmatprep.subr.mxu0 0.0
      %2382 = vmatpush1.msra.mxu0 0.0
      %2383 = vmatprep.subr.mxu0 0.0
      %2384 = vmatpush1.msra.mxu0 0.0
      %2385 = vmatprep.subr.mxu0 0.0
      %2386 = vmatpush1.msra.mxu0 0.0
      %2387 = vmatprep.subr.mxu0 0.0
      %2388 = vmatpush1.msra.mxu0 0.0
      %2389 = vmatprep.subr.mxu0 0.0
      %2390 = vmatpush1.msra.mxu0 0.0
      %2391 = vmatprep.subr.mxu0 0.0
      %2392 = vmatpush1.msra.mxu0 0.0
      %2393 = vmatprep.subr.mxu0 0.0
      %2394 = vmatpush1.msra.mxu0 0.0
      %2395 = vmatprep.subr.mxu0 0.0
      %2396 = vmatpush1.msra.mxu0 0.0
      %2397 = vmatprep.subr.mxu0 0.0
      %2398 = vmatpush1.msra.mxu0 0.0
      %2399 = vmatprep.subr.mxu0 0.0
      %2400 = vmatpush1.msra.mxu0 0.0
      %2401 = vmatprep.subr.mxu0 0.0
      %2402 = vmatpush1.msra.mxu0 0.0
      %2403 = vmatprep.subr.mxu0 0.0
      %2404 = vmatpush1.msra.mxu0 0.0
      %2405 = vmatprep.subr.mxu0 0.0
      %2406 = vmatpush1.msra.mxu0 0.0
      %2407 = vmatprep.subr.mxu0 0.0
      %2408 = vmatpush1.msra.mxu0 0.0
      %2409 = vmatprep.subr.mxu0 0.0
      %2410 = vmatpush1.msra.mxu0 0.0
      %2411 = vmatprep.subr.mxu0 0.0
      %2412 = vmatpush1.msra.mxu0 0.0
      %2413 = vmatprep.subr.mxu0 0.0
      %2414 = vmatpush1.msra.mxu0 0.0
      %2415 = vmatprep.subr.mxu0 0.0
      %2416 = vmatpush1.msra.mxu0 0.0
      %2417 = vmatprep.subr.mxu0 0.0
      %2418 = vmatpush1.msra.mxu0 0.0
      %2419 = vmatprep.subr.mxu0 0.0
      %2420 = vmatpush1.msra.mxu0 0.0
      %2421 = vmatprep.mubr.f32.mxu0 0.0
      %2422 = vmatmul.mubr.f32.gmra.mrb[0].mxu0 %v2145
      %v2423 = vpop.f32.mrb[0].mxu0
      %v2424 = vadd.f32 0.0, %v2423
      %v2425 = vpop.f32.mrb[0].mxu0
      %2426 = vmatprep.mubr.f32.mxu0 0.0
      %2427 = vmatmul.mubr.f32.gmra.mrb[0].mxu0 %v2148
      %v2428 = vpop.f32.mrb[0].mxu0
      %v2429 = vadd.f32 0.0, %v2428
      %v2430 = vpop.f32.mrb[0].mxu0
      %2431 = vmatprep.mubr.f32.mxu0 0.0
      %2432 = vmatmul.mubr.f32.gmra.mrb[0].mxu0 %v2151
      %v2433 = vpop.f32.mrb[0].mxu0
      %v2434 = vadd.f32 0.0, %v2433
      %v2435 = vpop.f32.mrb[0].mxu0
      %2436 = vmatprep.mubr.f32.mxu0 0.0
      %2437 = vmatmul.mubr.f32.gmra.mrb[0].mxu0 %v2154
      %v2438 = vpop.f32.mrb[0].mxu0
      %v2439 = vadd.f32 0.0, %v2438
      %v2440 = vpop.f32.mrb[0].mxu0
      %2441 = vmatprep.mubr.f32.mxu0 0.0
      %2442 = vmatmul.mubr.f32.gmra.mrb[0].mxu0 %v2157
      %v2443 = vpop.f32.mrb[0].mxu0
      %v2444 = vadd.f32 0.0, %v2443
      %v2445 = vpop.f32.mrb[0].mxu0
      %2446 = vmatprep.mubr.f32.mxu0 0.0
      %2447 = vmatmul.mubr.f32.gmra.mrb[0].mxu0 %v2160
      %v2448 = vpop.f32.mrb[0].mxu0
      %v2449 = vadd.f32 0.0, %v2448
      %v2450 = vpop.f32.mrb[0].mxu0
      %2451 = vmatprep.mubr.f32.mxu0 0.0
      %2452 = vmatmul.mubr.f32.gmra.mrb[0].mxu0 %v2163
      %v2453 = vpop.f32.mrb[0].mxu0
      %v2454 = vadd.f32 0.0, %v2453
      %v2455 = vpop.f32.mrb[0].mxu0
      %2456 = vmatprep.mubr.f32.mxu0 0.0
      %2457 = vmatmul.mubr.f32.gmra.mrb[0].mxu0 %v2166
      %v2458 = vpop.f32.mrb[0].mxu0
      %v2459 = vadd.f32 0.0, %v2458
      %v2460 = vpop.f32.mrb[0].mxu0
      %2461 = vmatprep.mubr.f32.mxu0 0.0
      %2462 = vmatmul.mubr.f32.gmra.mrb[0].mxu0 %v2169
      %v2463 = vpop.f32.mrb[0].mxu0
      %v2464 = vadd.f32 0.0, %v2463
      %v2465 = vpop.f32.mrb[0].mxu0
      %2466 = vmatprep.mubr.f32.mxu0 0.0
      %2467 = vmatmul.mubr.f32.gmra.mrb[0].mxu0 %v2172
      %v2468 = vpop.f32.mrb[0].mxu0
      %v2469 = vadd.f32 0.0, %v2468
      %v2470 = vpop.f32.mrb[0].mxu0
      %2471 = vmatprep.mubr.f32.mxu0 0.0
      %2472 = vmatmul.mubr.f32.gmra.mrb[0].mxu0 %v2175
      %v2473 = vpop.f32.mrb[0].mxu0
      %v2474 = vadd.f32 0.0, %v2473
      %v2475 = vpop.f32.mrb[0].mxu0
      %2476 = vmatprep.mubr.f32.mxu0 0.0
      %2477 = vmatmul.mubr.f32.gmra.mrb[0].mxu0 %v2178
      %v2478 = vpop.f32.mrb[0].mxu0
      %v2479 = vadd.f32 0.0, %v2478
      %v2480 = vpop.f32.mrb[0].mxu0
      %2481 = vmatprep.mubr.f32.mxu0 0.0
      %2482 = vmatmul.mubr.f32.gmra.mrb[0].mxu0 %v2181
      %v2483 = vpop.f32.mrb[0].mxu0
      %v2484 = vadd.f32 0.0, %v2483
      %v2485 = vpop.f32.mrb[0].mxu0
      %2486 = vmatprep.mubr.f32.mxu0 0.0
      %2487 = vmatmul.mubr.f32.gmra.mrb[0].mxu0 %v2184
      %v2488 = vpop.f32.mrb[0].mxu0
      %v2489 = vadd.f32 0.0, %v2488
      %v2490 = vpop.f32.mrb[0].mxu0
      %2491 = vmatprep.mubr.f32.mxu0 0.0
      %2492 = vmatmul.mubr.f32.gmra.mrb[0].mxu0 %v2352
      %v2493 = vpop.f32.mrb[0].mxu0
      %v2494 = vadd.f32 0.0, %v2493
      %v2495 = vpop.f32.mrb[0].mxu0
      %2496 = vmatprep.mubr.f32.mxu0 0.0
      %2497 = vmatmul.mubr.f32.gmra.mrb[0].mxu0 %v2355
      %v2498 = vpop.f32.mrb[0].mxu0
      %v2499 = vadd.f32 0.0, %v2498
      %v2500 = vpop.f32.mrb[0].mxu0
      %2501 = vdwg.mxu0
      %v2502 = vadd.f32 %v2331, %v2424
      %v2503 = vadd.f32 %v2332, %v2429
      %v2504 = vadd.f32 %v2333, %v2434
      %v2505 = vadd.f32 %v2334, %v2439
      %v2506 = vadd.f32 %v2335, %v2444
      %v2507 = vadd.f32 %v2336, %v2449
      %v2508 = vadd.f32 %v2337, %v2454
      %v2509 = vadd.f32 %v2338, %v2459
      %v2510 = vadd.f32 %v2339, %v2464
      %v2511 = vadd.f32 %v2340, %v2469
      %v2512 = vadd.f32 %v2341, %v2474
      %v2513 = vadd.f32 %v2342, %v2479
      %v2514 = vadd.f32 %v2343, %v2484
      %v2515 = vadd.f32 %v2344, %v2489
      %v2516 = vadd.f32 %v2345, %v2494
      %v2517 = vadd.f32 %v2346, %v2499
      %s2518 = scalar_lea.vmem %s4, 48
      %v2519 = vld [vmem:[%s2518] sm:$0xff]
      %v2520 = vld [vmem:[%s2518 + $0x8] sm:$0xff]
      %v2521 = vld [vmem:[%s2518 + $0x10] sm:$0xff]
      %v2523 = vsel %vm2137, %v2132, 0
      %v2526 = vsel %vm2137, %v2133, 0
      %2528 = vmatprep.subr.mxu0 0.0
      %2529 = vmatpush1.msra.mxu0 %v2519
      %2530 = vmatprep.subr.mxu0 0.0
      %2531 = vmatpush1.msra.mxu0 %v2520
      %2532 = vmatprep.subr.mxu0 0.0
      %2533 = vmatpush1.msra.mxu0 %v2521
      %2534 = vmatprep.subr.mxu0 0.0
      %2535 = vmatpush1.msra.mxu0 0.0
      %2536 = vmatprep.subr.mxu0 0.0
      %2537 = vmatpush1.msra.mxu0 0.0
      %2538 = vmatprep.subr.mxu0 0.0
      %2539 = vmatpush1.msra.mxu0 0.0
      %2540 = vmatprep.subr.mxu0 0.0
      %2541 = vmatpush1.msra.mxu0 0.0
      %2542 = vmatprep.subr.mxu0 0.0
      %2543 = vmatpush1.msra.mxu0 0.0
      %2544 = vmatprep.subr.mxu0 0.0
      %2545 = vmatpush1.msra.mxu0 0.0
      %2546 = vmatprep.subr.mxu0 0.0
      %2547 = vmatpush1.msra.mxu0 0.0
      %2548 = vmatprep.subr.mxu0 0.0
      %2549 = vmatpush1.msra.mxu0 0.0
      %2550 = vmatprep.subr.mxu0 0.0
      %2551 = vmatpush1.msra.mxu0 0.0
      %2552 = vmatprep.subr.mxu0 0.0
      %2553 = vmatpush1.msra.mxu0 0.0
      %2554 = vmatprep.subr.mxu0 0.0
      %2555 = vmatpush1.msra.mxu0 0.0
      %2556 = vmatprep.subr.mxu0 0.0
      %2557 = vmatpush1.msra.mxu0 0.0
      %2558 = vmatprep.subr.mxu0 0.0
      %2559 = vmatpush1.msra.mxu0 0.0
      %2560 = vmatprep.subr.mxu0 0.0
      %2561 = vmatpush1.msra.mxu0 0.0
      %2562 = vmatprep.subr.mxu0 0.0
      %2563 = vmatpush1.msra.mxu0 0.0
      %2564 = vmatprep.subr.mxu0 0.0
      %2565 = vmatpush1.msra.mxu0 0.0
      %2566 = vmatprep.subr.mxu0 0.0
      %2567 = vmatpush1.msra.mxu0 0.0
      %2568 = vmatprep.subr.mxu0 0.0
      %2569 = vmatpush1.msra.mxu0 0.0
      %2570 = vmatprep.subr.mxu0 0.0
      %2571 = vmatpush1.msra.mxu0 0.0
      %2572 = vmatprep.subr.mxu0 0.0
      %2573 = vmatpush1.msra.mxu0 0.0
      %2574 = vmatprep.subr.mxu0 0.0
      %2575 = vmatpush1.msra.mxu0 0.0
      %2576 = vmatprep.subr.mxu0 0.0
      %2577 = vmatpush1.msra.mxu0 0.0
      %2578 = vmatprep.subr.mxu0 0.0
      %2579 = vmatpush1.msra.mxu0 0.0
      %2580 = vmatprep.subr.mxu0 0.0
      %2581 = vmatpush1.msra.mxu0 0.0
      %2582 = vmatprep.subr.mxu0 0.0
      %2583 = vmatpush1.msra.mxu0 0.0
      %2584 = vmatprep.subr.mxu0 0.0
      %2585 = vmatpush1.msra.mxu0 0.0
      %2586 = vmatprep.subr.mxu0 0.0
      %2587 = vmatpush1.msra.mxu0 0.0
      %2588 = vmatprep.subr.mxu0 0.0
      %2589 = vmatpush1.msra.mxu0 0.0
      %2590 = vmatprep.subr.mxu0 0.0
      %2591 = vmatpush1.msra.mxu0 0.0
      %2592 = vmatprep.mubr.f32.mxu0 0.0
      %2593 = vmatmul.mubr.f32.gmra.mrb[0].mxu0 %v2151
      %v2594 = vpop.f32.mrb[0].mxu0
      %v2595 = vadd.f32 0.0, %v2594
      %v2596 = vpop.f32.mrb[0].mxu0
      %2597 = vmatprep.mubr.f32.mxu0 0.0
      %2598 = vmatmul.mubr.f32.gmra.mrb[0].mxu0 %v2154
      %v2599 = vpop.f32.mrb[0].mxu0
      %v2600 = vadd.f32 0.0, %v2599
      %v2601 = vpop.f32.mrb[0].mxu0
      %2602 = vmatprep.mubr.f32.mxu0 0.0
      %2603 = vmatmul.mubr.f32.gmra.mrb[0].mxu0 %v2157
      %v2604 = vpop.f32.mrb[0].mxu0
      %v2605 = vadd.f32 0.0, %v2604
      %v2606 = vpop.f32.mrb[0].mxu0
      %2607 = vmatprep.mubr.f32.mxu0 0.0
      %2608 = vmatmul.mubr.f32.gmra.mrb[0].mxu0 %v2160
      %v2609 = vpop.f32.mrb[0].mxu0
      %v2610 = vadd.f32 0.0, %v2609
      %v2611 = vpop.f32.mrb[0].mxu0
      %2612 = vmatprep.mubr.f32.mxu0 0.0
      %2613 = vmatmul.mubr.f32.gmra.mrb[0].mxu0 %v2163
      %v2614 = vpop.f32.mrb[0].mxu0
      %v2615 = vadd.f32 0.0, %v2614
      %v2616 = vpop.f32.mrb[0].mxu0
      %2617 = vmatprep.mubr.f32.mxu0 0.0
      %2618 = vmatmul.mubr.f32.gmra.mrb[0].mxu0 %v2166
      %v2619 = vpop.f32.mrb[0].mxu0
      %v2620 = vadd.f32 0.0, %v2619
      %v2621 = vpop.f32.mrb[0].mxu0
      %2622 = vmatprep.mubr.f32.mxu0 0.0
      %2623 = vmatmul.mubr.f32.gmra.mrb[0].mxu0 %v2169
      %v2624 = vpop.f32.mrb[0].mxu0
      %v2625 = vadd.f32 0.0, %v2624
      %v2626 = vpop.f32.mrb[0].mxu0
      %2627 = vmatprep.mubr.f32.mxu0 0.0
      %2628 = vmatmul.mubr.f32.gmra.mrb[0].mxu0 %v2172
      %v2629 = vpop.f32.mrb[0].mxu0
      %v2630 = vadd.f32 0.0, %v2629
      %v2631 = vpop.f32.mrb[0].mxu0
      %2632 = vmatprep.mubr.f32.mxu0 0.0
      %2633 = vmatmul.mubr.f32.gmra.mrb[0].mxu0 %v2175
      %v2634 = vpop.f32.mrb[0].mxu0
      %v2635 = vadd.f32 0.0, %v2634
      %v2636 = vpop.f32.mrb[0].mxu0
      %2637 = vmatprep.mubr.f32.mxu0 0.0
      %2638 = vmatmul.mubr.f32.gmra.mrb[0].mxu0 %v2178
      %v2639 = vpop.f32.mrb[0].mxu0
      %v2640 = vadd.f32 0.0, %v2639
      %v2641 = vpop.f32.mrb[0].mxu0
      %2642 = vmatprep.mubr.f32.mxu0 0.0
      %2643 = vmatmul.mubr.f32.gmra.mrb[0].mxu0 %v2181
      %v2644 = vpop.f32.mrb[0].mxu0
      %v2645 = vadd.f32 0.0, %v2644
      %v2646 = vpop.f32.mrb[0].mxu0
      %2647 = vmatprep.mubr.f32.mxu0 0.0
      %2648 = vmatmul.mubr.f32.gmra.mrb[0].mxu0 %v2184
      %v2649 = vpop.f32.mrb[0].mxu0
      %v2650 = vadd.f32 0.0, %v2649
      %v2651 = vpop.f32.mrb[0].mxu0
      %2652 = vmatprep.mubr.f32.mxu0 0.0
      %2653 = vmatmul.mubr.f32.gmra.mrb[0].mxu0 %v2352
      %v2654 = vpop.f32.mrb[0].mxu0
      %v2655 = vadd.f32 0.0, %v2654
      %v2656 = vpop.f32.mrb[0].mxu0
      %2657 = vmatprep.mubr.f32.mxu0 0.0
      %2658 = vmatmul.mubr.f32.gmra.mrb[0].mxu0 %v2355
      %v2659 = vpop.f32.mrb[0].mxu0
      %v2660 = vadd.f32 0.0, %v2659
      %v2661 = vpop.f32.mrb[0].mxu0
      %2662 = vmatprep.mubr.f32.mxu0 0.0
      %2663 = vmatmul.mubr.f32.gmra.mrb[0].mxu0 %v2523
      %v2664 = vpop.f32.mrb[0].mxu0
      %v2665 = vadd.f32 0.0, %v2664
      %v2666 = vpop.f32.mrb[0].mxu0
      %2667 = vmatprep.mubr.f32.mxu0 0.0
      %2668 = vmatmul.mubr.f32.gmra.mrb[0].mxu0 %v2526
      %v2669 = vpop.f32.mrb[0].mxu0
      %v2670 = vadd.f32 0.0, %v2669
      %v2671 = vpop.f32.mrb[0].mxu0
      %2672 = vdwg.mxu0
      %v2673 = vadd.f32 %v2502, %v2595
      %v2674 = vadd.f32 %v2503, %v2600
      %v2675 = vadd.f32 %v2504, %v2605
      %v2676 = vadd.f32 %v2505, %v2610
      %v2677 = vadd.f32 %v2506, %v2615
      %v2678 = vadd.f32 %v2507, %v2620
      %v2679 = vadd.f32 %v2508, %v2625
      %v2680 = vadd.f32 %v2509, %v2630
      %v2681 = vadd.f32 %v2510, %v2635
      %v2682 = vadd.f32 %v2511, %v2640
      %v2683 = vadd.f32 %v2512, %v2645
      %v2684 = vadd.f32 %v2513, %v2650
      %v2685 = vadd.f32 %v2514, %v2655
      %v2686 = vadd.f32 %v2515, %v2660
      %v2687 = vadd.f32 %v2516, %v2665
      %v2688 = vadd.f32 %v2517, %v2670
      %v2689 = vld [vmem:[%s5] sm:$0x1]
      %v2691 = vlaneseq
      %v2692 = vshrl.u32 %v2691, 7
      %v2693 = vsub.s32 0, %v2692
      %v2694 = vrot.slane %v2689, %v2693
      %v2696 = vadd.f32 %v2673, %v2694
      %v2697 = vadd.f32 %v2674, %v2694
      %v2698 = vadd.f32 %v2675, %v2694
      %v2699 = vadd.f32 %v2676, %v2694
      %v2700 = vadd.f32 %v2677, %v2694
      %v2701 = vadd.f32 %v2678, %v2694
      %v2702 = vadd.f32 %v2679, %v2694
      %v2703 = vadd.f32 %v2680, %v2694
      %v2704 = vadd.f32 %v2681, %v2694
      %v2705 = vadd.f32 %v2682, %v2694
      %v2706 = vadd.f32 %v2683, %v2694
      %v2707 = vadd.f32 %v2684, %v2694
      %v2708 = vadd.f32 %v2685, %v2694
      %v2709 = vadd.f32 %v2686, %v2694
      %v2710 = vadd.f32 %v2687, %v2694
      %v2711 = vadd.f32 %v2688, %v2694
      %2712 = vst.msk [vmem:[%s424] sm:$0xff] %vm825, %v2696
      %2713 = vst.msk [vmem:[%s424 + $0x8] sm:$0xff] %vm825, %v2697
      %2714 = vst.msk [vmem:[%s424 + $0x10] sm:$0xff] %vm825, %v2698
      %2715 = vst.msk [vmem:[%s424 + $0x18] sm:$0xff] %vm825, %v2699
      %2716 = vst.msk [vmem:[%s424 + $0x20] sm:$0xff] %vm825, %v2700
      %2717 = vst.msk [vmem:[%s424 + $0x28] sm:$0xff] %vm825, %v2701
      %2718 = vst.msk [vmem:[%s424 + $0x30] sm:$0xff] %vm825, %v2702
      %2719 = vst.msk [vmem:[%s424 + $0x38] sm:$0xff] %vm825, %v2703
      %2720 = vst.msk [vmem:[%s424 + $0x40] sm:$0xff] %vm825, %v2704
      %2721 = vst.msk [vmem:[%s424 + $0x48] sm:$0xff] %vm825, %v2705
      %2722 = vst.msk [vmem:[%s424 + $0x50] sm:$0xff] %vm825, %v2706
      %2723 = vst.msk [vmem:[%s424 + $0x58] sm:$0xff] %vm825, %v2707
      %2724 = vst.msk [vmem:[%s424 + $0x60] sm:$0xff] %vm825, %v2708
      %2725 = vst.msk [vmem:[%s424 + $0x68] sm:$0xff] %vm825, %v2709
      %2726 = vst.msk [vmem:[%s424 + $0x70] sm:$0xff] %vm825, %v2710
      %2727 = vst.msk [vmem:[%s424 + $0x78] sm:$0xff] %vm825, %v2711
      %s2728 = smul.u32 16, %s24
      %p2729 = scmp.lt.s32.totalorder %s23, 1
      %s2730 = scalar_select %p2729, %s23, 1
      %p2731 = scmp.lt.s32.totalorder %s2728, 31
      %s2732 = scalar_select %p2731, %s2728, 31
      %s2733 = smul.addr %s2730, 32
      %s2734 = sadd.s32 %s2732, %s2733
      %s2735 = smul.addr %s2734, 8
      %s2736 = scalar_lea.vmem %s8, %s2735
      // Predicated region
      $region61: #{tpu_custom_call.1} parent=51 // pred_check
        %p2737 = pneg %p237
      $region62: #{tpu_custom_call.1} parent=51 // pred_check_branch
        %2739 = sbr.rel (%p2737) target = $region64
      $region63: #{tpu_custom_call.1} parent=51 // pred_region
        %s2740 = smul.u32 16, %s24
      $region64: #{tpu_custom_call.1} parent=51 // pred_fallthru
        _
    $region52: #{tpu_custom_call.1} parent=5 // pred_fallthru
      _
    %p2741 = scmp.le.s32.totalorder 2, %s14
    // Predicated region
    $region65: #{tpu_custom_call.1} parent=5 // pred_check
      %p2742 = pneg %p2741
    $region66: #{tpu_custom_call.1} parent=5 // pred_check_branch
      %2744 = sbr.rel (%p2742) target = $region68
    $region67: #{tpu_custom_call.1} parent=5 // pred_region
      %s2745 = ssub.s32 %s14, 2
      // Predicated region
      $region69: #{tpu_custom_call.1} parent=67 // pred_check
        %p2746 = pneg %p243
      $region70: #{tpu_custom_call.1} parent=67 // pred_check_branch
        %2748 = sbr.rel (%p2746) target = $region72
      $region71: #{tpu_custom_call.1} parent=67 // pred_region
        %s2749 = smul.u32 16, %s26
        %p2750 = scmp.lt.s32.totalorder %s25, 1
        %s2751 = scalar_select %p2750, %s25, 1
        %p2752 = scmp.lt.s32.totalorder %s2749, 31
        %s2753 = scalar_select %p2752, %s2749, 31
        %s2754 = smul.addr %s2751, 32
        %s2755 = sadd.s32 %s2753, %s2754
        %s2756 = smul.addr %s2755, 8
        %s2757 = scalar_lea.vmem %s8, %s2756
      $region72: #{tpu_custom_call.1} parent=67 // pred_fallthru
        _
    $region68: #{tpu_custom_call.1} parent=5 // pred_fallthru
      _
  $region6: #{tpu_custom_call.1} parent=0 // loop_footer
    %s18 = sadd.s32 1, %s14
  $region7: #{tpu_custom_call.1} parent=0 // loop_footer_branch
    %13 = sbr.rel target = $region3
  $region8: #{tpu_custom_call.1} parent=0 // loop_exit
    _

</llo_original>
